<compile_context>
chip_gen: v7x
topology: tpu7x:2x2x1
jax: 0.10.0
libtpu: 0.0.40
codegen_flags: <defaults>
</compile_context>

<pallas_src>
import jax
import jax.numpy as jnp
from jax import lax
from jax.experimental import pallas as pl
from jax.experimental.pallas import tpu as pltpu


def _round_up(x, m):
    return ((x + m - 1) // m) * m


# ----------------------------- Pallas kernel --------------------------------
def _make_kernel(K, Wp, L_blk):
    """Conv over a flat, width-padded image.

    x_ref : (1, C_in, Lp)       bf16, Lp >= (K-1)*(Wp+1) + L_blk (tail-padded)
    w_ref : (K*K, C_out, C_in)  bf16, tap-major weights
    b_ref : (C_out, 1)          f32
    o_ref : (1, C_out, L_blk)   f32, L_blk = round_up(H_out*Wp, 128)
                                (junk columns are sliced away by the wrapper)
    """
    KK = K * K

    def kernel(x_ref, w_ref, b_ref, o_ref):
        x = x_ref[0]          # (C_in, Lp)          bf16, loaded once
        w = w_ref[...]        # (KK, C_out, C_in)   bf16, loaded once (hoisted)
        acc = None
        for k in range(KK):                       # static unroll over taps
            kh, kw = divmod(k, K)
            base = kh * Wp + kw
            patch = x[:, base:base + L_blk]       # (C_in, L_blk) lane-shifted view
            t = jnp.dot(w[k], patch, preferred_element_type=jnp.float32)
            acc = t if acc is None else acc + t   # init from tap 0, f32 accumulate
        o_ref[0] = (acc + b_ref[...]).astype(o_ref.dtype)

    return kernel


# ------------------------------ wrapper --------------------------------------
def _src_index(n_in, scale, pad):
    """Indices into the ORIGINAL axis for (nearest upsample by `scale`) then
    (reflection pad by `pad`) of the upsampled axis."""
    n_up = n_in * scale
    j = jnp.arange(-pad, n_up + pad)
    j = jnp.abs(j)                                      # reflect below 0
    j = jnp.where(j >= n_up, 2 * (n_up - 1) - j, j)     # reflect above n_up-1
    return (j // scale).astype(jnp.int32)


def upsample_conv_forward(x, weight, bias, *, kernel_size, stride=1, upsample=None):
    """x: (N, C_in, H, W) f32 (NCHW, PyTorch layout).  Returns (N, C_out, Ho, Wo) f32."""
    assert stride == 1, "TODO(synk): stride > 1 not implemented in the Pallas path"
    assert upsample is None or int(upsample) == upsample, "integer scale_factor only"

    N, C_in, H, W = x.shape
    C_out = weight.shape[0]
    K = int(kernel_size)
    p = K // 2
    s = int(upsample) if upsample else 1

    Hu, Wu = H * s, W * s
    Hp, Wp = Hu + 2 * p, Wu + 2 * p
    Ho, Wo = Hp - K + 1, Wp - K + 1

    L_out = Ho * Wp                            # valid slab width (junk cols at row ends)
    L_blk = _round_up(L_out, 128)              # lane-dense output width (unmasked vst)
    Lp = _round_up(max(Hp * Wp, (K - 1) * (Wp + 1) + L_blk), 128)

    # Fused nearest-upsample + reflection-pad as one gather (wrapper-side plumbing).
    row_idx = _src_index(H, s, p)              # (Hp,)
    col_idx = _src_index(W, s, p)              # (Wp,)
    x_pad = x[:, :, row_idx[:, None], col_idx[None, :]]          # (N, C_in, Hp, Wp)
    x_flat = x_pad.reshape(N, C_in, Hp * Wp)
    x_flat = jnp.pad(x_flat, ((0, 0), (0, 0), (0, Lp - Hp * Wp)))
    x_flat = x_flat.astype(jnp.bfloat16)

    # Tap-major weights (K*K, C_out, C_in), bf16 for the MXU dots.
    w_taps = jnp.transpose(weight, (2, 3, 0, 1)).reshape(K * K, C_out, C_in)
    w_taps = w_taps.astype(jnp.bfloat16)
    b_col = bias.astype(jnp.float32).reshape(C_out, 1)

    kernel = _make_kernel(K, Wp, L_blk)
    out_flat = pl.pallas_call(
        kernel,
        out_shape=jax.ShapeDtypeStruct((N, C_out, L_blk), jnp.float32),
        grid=(N,),
        in_specs=[
            pl.BlockSpec((1, C_in, Lp), lambda n: (n, 0, 0)),
            pl.BlockSpec((K * K, C_out, C_in), lambda n: (0, 0, 0)),
            pl.BlockSpec((C_out, 1), lambda n: (0, 0)),
        ],
        out_specs=pl.BlockSpec((1, C_out, L_blk), lambda n: (n, 0, 0)),
        compiler_params=pltpu.CompilerParams(dimension_semantics=("parallel",)),
    )(x_flat, w_taps, b_col)

    # Lane-dense slab -> NCHW: drop the lane padding, then the (K-1) junk
    # columns at the end of each row.
    out = out_flat[:, :, :L_out].reshape(N, C_out, Ho, Wp)[:, :, :, :Wo]
    return out


# --------------------------- plain-JAX reference -----------------------------
def reference_forward(x, weight, bias, *, kernel_size, stride=1, upsample=None):
    x_in = x
    if upsample:
        s = int(upsample)
        x_in = jnp.repeat(jnp.repeat(x_in, s, axis=2), s, axis=3)   # nearest
    p = int(kernel_size) // 2
    if p > 0:
        x_in = jnp.pad(x_in, ((0, 0), (0, 0), (p, p), (p, p)), mode="reflect")
    out = lax.conv_general_dilated(
        x_in, weight, (stride, stride), "VALID",
        dimension_numbers=("NCHW", "OIHW", "NCHW"),
        precision=lax.Precision.HIGHEST)
    return out + bias[None, :, None, None]


# ------------------------------------ main -----------------------------------
if __name__ == "__main__":
    key = jax.random.PRNGKey(0)
    k1, k2, k3, k4, k5 = jax.random.split(key, 5)

    # Config 1: canonical UpsampleConvLayer(in=4, out=8, kernel_size=3, stride=1, upsample=2)
    N, C_in, H, W = 2, 4, 16, 16
    C_out, K, stride, upsample = 8, 3, 1, 2
    fan_in = C_in * K * K
    bound = (1.0 / fan_in) ** 0.5

    x = jax.random.normal(k1, (N, C_in, H, W), jnp.float32)
    w = jax.random.uniform(k2, (C_out, C_in, K, K), jnp.float32, -bound, bound)
    b = jax.random.uniform(k3, (C_out,), jnp.float32, -bound, bound)

    y = upsample_conv_forward(x, w, b, kernel_size=K, stride=stride, upsample=upsample)
    jax.block_until_ready(y)
    assert y.shape == (N, C_out, H * upsample, W * upsample)

    # Tight check: same bf16-quantized inputs, f32 math (validates indexing/taps).
    y_ref_q = reference_forward(
        x.astype(jnp.bfloat16).astype(jnp.float32),
        w.astype(jnp.bfloat16).astype(jnp.float32), b,
        kernel_size=K, stride=stride, upsample=upsample)
    assert jnp.allclose(y, y_ref_q, rtol=1e-3, atol=1e-3), \
        float(jnp.max(jnp.abs(y - y_ref_q)))

    # Loose check vs full-f32 module semantics (slack accounts for bf16 MXU inputs).
    y_ref = reference_forward(x, w, b, kernel_size=K, stride=stride, upsample=upsample)
    assert jnp.allclose(y, y_ref, rtol=5e-2, atol=5e-2), \
        float(jnp.max(jnp.abs(y - y_ref)))

    # Config 2: no-upsample branch (upsample=None), kernel_size=3, stride=1.
    C_out2 = 4
    w2 = jax.random.uniform(k4, (C_out2, C_in, K, K), jnp.float32, -bound, bound)
    b2 = jax.random.uniform(k5, (C_out2,), jnp.float32, -bound, bound)
    y2 = upsample_conv_forward(x, w2, b2, kernel_size=K, stride=1, upsample=None)
    jax.block_until_ready(y2)
    assert y2.shape == (N, C_out2, H, W)
    y2_ref = reference_forward(x, w2, b2, kernel_size=K, stride=1, upsample=None)
    assert jnp.allclose(y2, y2_ref, rtol=5e-2, atol=5e-2), \
        float(jnp.max(jnp.abs(y2 - y2_ref)))

    print("KERNEL_OK")
</pallas_src>

<mosaic_0001>
module attributes {stable_mosaic.version = 11 : i64} {
  func.func @kernel(%arg0: i32, %arg1: memref<1x4x1280xbf16, #tpu.memory_space<vmem>>, %arg2: memref<9x8x4xbf16, #tpu.memory_space<vmem>>, %arg3: memref<8x1xf32, #tpu.memory_space<vmem>>, %arg4: memref<1x8x1152xf32, #tpu.memory_space<vmem>>) attributes {dimension_semantics = [#tpu.dimension_semantics<parallel>], iteration_bounds = array<i64: 2>, scalar_prefetch = 0 : i64, scratch_operands = 0 : i64, tpu.core_type = #tpu.core_type<tc>, window_params = [{transform_indices = @transform_0, window_bounds = array<i64: 1, 4, 1280>}, {pipeline_mode = #tpu.pipeline_mode<synchronous>, transform_indices = @transform_1, window_bounds = array<i64: 9, 8, 4>}, {pipeline_mode = #tpu.pipeline_mode<synchronous>, transform_indices = @transform_2, window_bounds = array<i64: 8, 1>}, {transform_indices = @transform_3, window_bounds = array<i64: 1, 8, 1152>}]} {
    %c0 = arith.constant 0 : index
    %c0_0 = arith.constant 0 : index
    %c0_1 = arith.constant 0 : index
    %0 = vector.load %arg1[%c0, %c0_0, %c0_1] : memref<1x4x1280xbf16, #tpu.memory_space<vmem>>, vector<1x4x1280xbf16>
    %1 = vector.shape_cast %0 : vector<1x4x1280xbf16> to vector<4x1280xbf16>
    %c0_2 = arith.constant 0 : index
    %c0_3 = arith.constant 0 : index
    %c0_4 = arith.constant 0 : index
    %2 = vector.load %arg2[%c0_2, %c0_3, %c0_4] : memref<9x8x4xbf16, #tpu.memory_space<vmem>>, vector<9x8x4xbf16>
    %3 = vector.extract_strided_slice %1 {offsets = [0, 0], sizes = [4, 1152], strides = [1, 1]} : vector<4x1280xbf16> to vector<4x1152xbf16>
    %4 = vector.extract_strided_slice %2 {offsets = [0, 0, 0], sizes = [1, 8, 4], strides = [1, 1, 1]} : vector<9x8x4xbf16> to vector<1x8x4xbf16>
    %5 = vector.shape_cast %4 : vector<1x8x4xbf16> to vector<8x4xbf16>
    %cst = arith.constant dense<0.000000e+00> : vector<8x1152xf32>
    %6 = tpu.matmul %5, %3, %cst {dimension_numbers = #tpu.dot_dimension_numbers<[1], [0], [0], [1], [0, 0, 1, 1], [], []>} : vector<8x4xbf16>, vector<4x1152xbf16>, vector<8x1152xf32> -> vector<8x1152xf32>
    %7 = vector.extract_strided_slice %1 {offsets = [0, 1], sizes = [4, 1152], strides = [1, 1]} : vector<4x1280xbf16> to vector<4x1152xbf16>
    %8 = vector.extract_strided_slice %2 {offsets = [1, 0, 0], sizes = [1, 8, 4], strides = [1, 1, 1]} : vector<9x8x4xbf16> to vector<1x8x4xbf16>
    %9 = vector.shape_cast %8 : vector<1x8x4xbf16> to vector<8x4xbf16>
    %cst_5 = arith.constant dense<0.000000e+00> : vector<8x1152xf32>
    %10 = tpu.matmul %9, %7, %cst_5 {dimension_numbers = #tpu.dot_dimension_numbers<[1], [0], [0], [1], [0, 0, 1, 1], [], []>} : vector<8x4xbf16>, vector<4x1152xbf16>, vector<8x1152xf32> -> vector<8x1152xf32>
    %11 = arith.addf %6, %10 : vector<8x1152xf32>
    %12 = vector.extract_strided_slice %1 {offsets = [0, 2], sizes = [4, 1152], strides = [1, 1]} : vector<4x1280xbf16> to vector<4x1152xbf16>
    %13 = vector.extract_strided_slice %2 {offsets = [2, 0, 0], sizes = [1, 8, 4], strides = [1, 1, 1]} : vector<9x8x4xbf16> to vector<1x8x4xbf16>
    %14 = vector.shape_cast %13 : vector<1x8x4xbf16> to vector<8x4xbf16>
    %cst_6 = arith.constant dense<0.000000e+00> : vector<8x1152xf32>
    %15 = tpu.matmul %14, %12, %cst_6 {dimension_numbers = #tpu.dot_dimension_numbers<[1], [0], [0], [1], [0, 0, 1, 1], [], []>} : vector<8x4xbf16>, vector<4x1152xbf16>, vector<8x1152xf32> -> vector<8x1152xf32>
    %16 = arith.addf %11, %15 : vector<8x1152xf32>
    %17 = vector.extract_strided_slice %1 {offsets = [0, 34], sizes = [4, 1152], strides = [1, 1]} : vector<4x1280xbf16> to vector<4x1152xbf16>
    %18 = vector.extract_strided_slice %2 {offsets = [3, 0, 0], sizes = [1, 8, 4], strides = [1, 1, 1]} : vector<9x8x4xbf16> to vector<1x8x4xbf16>
    %19 = vector.shape_cast %18 : vector<1x8x4xbf16> to vector<8x4xbf16>
    %cst_7 = arith.constant dense<0.000000e+00> : vector<8x1152xf32>
    %20 = tpu.matmul %19, %17, %cst_7 {dimension_numbers = #tpu.dot_dimension_numbers<[1], [0], [0], [1], [0, 0, 1, 1], [], []>} : vector<8x4xbf16>, vector<4x1152xbf16>, vector<8x1152xf32> -> vector<8x1152xf32>
    %21 = arith.addf %16, %20 : vector<8x1152xf32>
    %22 = vector.extract_strided_slice %1 {offsets = [0, 35], sizes = [4, 1152], strides = [1, 1]} : vector<4x1280xbf16> to vector<4x1152xbf16>
    %23 = vector.extract_strided_slice %2 {offsets = [4, 0, 0], sizes = [1, 8, 4], strides = [1, 1, 1]} : vector<9x8x4xbf16> to vector<1x8x4xbf16>
    %24 = vector.shape_cast %23 : vector<1x8x4xbf16> to vector<8x4xbf16>
    %cst_8 = arith.constant dense<0.000000e+00> : vector<8x1152xf32>
    %25 = tpu.matmul %24, %22, %cst_8 {dimension_numbers = #tpu.dot_dimension_numbers<[1], [0], [0], [1], [0, 0, 1, 1], [], []>} : vector<8x4xbf16>, vector<4x1152xbf16>, vector<8x1152xf32> -> vector<8x1152xf32>
    %26 = arith.addf %21, %25 : vector<8x1152xf32>
    %27 = vector.extract_strided_slice %1 {offsets = [0, 36], sizes = [4, 1152], strides = [1, 1]} : vector<4x1280xbf16> to vector<4x1152xbf16>
    %28 = vector.extract_strided_slice %2 {offsets = [5, 0, 0], sizes = [1, 8, 4], strides = [1, 1, 1]} : vector<9x8x4xbf16> to vector<1x8x4xbf16>
    %29 = vector.shape_cast %28 : vector<1x8x4xbf16> to vector<8x4xbf16>
    %cst_9 = arith.constant dense<0.000000e+00> : vector<8x1152xf32>
    %30 = tpu.matmul %29, %27, %cst_9 {dimension_numbers = #tpu.dot_dimension_numbers<[1], [0], [0], [1], [0, 0, 1, 1], [], []>} : vector<8x4xbf16>, vector<4x1152xbf16>, vector<8x1152xf32> -> vector<8x1152xf32>
    %31 = arith.addf %26, %30 : vector<8x1152xf32>
    %32 = vector.extract_strided_slice %1 {offsets = [0, 68], sizes = [4, 1152], strides = [1, 1]} : vector<4x1280xbf16> to vector<4x1152xbf16>
    %33 = vector.extract_strided_slice %2 {offsets = [6, 0, 0], sizes = [1, 8, 4], strides = [1, 1, 1]} : vector<9x8x4xbf16> to vector<1x8x4xbf16>
    %34 = vector.shape_cast %33 : vector<1x8x4xbf16> to vector<8x4xbf16>
    %cst_10 = arith.constant dense<0.000000e+00> : vector<8x1152xf32>
    %35 = tpu.matmul %34, %32, %cst_10 {dimension_numbers = #tpu.dot_dimension_numbers<[1], [0], [0], [1], [0, 0, 1, 1], [], []>} : vector<8x4xbf16>, vector<4x1152xbf16>, vector<8x1152xf32> -> vector<8x1152xf32>
    %36 = arith.addf %31, %35 : vector<8x1152xf32>
    %37 = vector.extract_strided_slice %1 {offsets = [0, 69], sizes = [4, 1152], strides = [1, 1]} : vector<4x1280xbf16> to vector<4x1152xbf16>
    %38 = vector.extract_strided_slice %2 {offsets = [7, 0, 0], sizes = [1, 8, 4], strides = [1, 1, 1]} : vector<9x8x4xbf16> to vector<1x8x4xbf16>
    %39 = vector.shape_cast %38 : vector<1x8x4xbf16> to vector<8x4xbf16>
    %cst_11 = arith.constant dense<0.000000e+00> : vector<8x1152xf32>
    %40 = tpu.matmul %39, %37, %cst_11 {dimension_numbers = #tpu.dot_dimension_numbers<[1], [0], [0], [1], [0, 0, 1, 1], [], []>} : vector<8x4xbf16>, vector<4x1152xbf16>, vector<8x1152xf32> -> vector<8x1152xf32>
    %41 = arith.addf %36, %40 : vector<8x1152xf32>
    %42 = vector.extract_strided_slice %1 {offsets = [0, 70], sizes = [4, 1152], strides = [1, 1]} : vector<4x1280xbf16> to vector<4x1152xbf16>
    %43 = vector.extract_strided_slice %2 {offsets = [8, 0, 0], sizes = [1, 8, 4], strides = [1, 1, 1]} : vector<9x8x4xbf16> to vector<1x8x4xbf16>
    %44 = vector.shape_cast %43 : vector<1x8x4xbf16> to vector<8x4xbf16>
    %cst_12 = arith.constant dense<0.000000e+00> : vector<8x1152xf32>
    %45 = tpu.matmul %44, %42, %cst_12 {dimension_numbers = #tpu.dot_dimension_numbers<[1], [0], [0], [1], [0, 0, 1, 1], [], []>} : vector<8x4xbf16>, vector<4x1152xbf16>, vector<8x1152xf32> -> vector<8x1152xf32>
    %46 = arith.addf %41, %45 : vector<8x1152xf32>
    %c0_13 = arith.constant 0 : index
    %c0_14 = arith.constant 0 : index
    %47 = vector.load %arg3[%c0_13, %c0_14] : memref<8x1xf32, #tpu.memory_space<vmem>>, vector<8x1xf32>
    %48 = vector.broadcast %47 : vector<8x1xf32> to vector<8x1152xf32>
    %49 = arith.addf %46, %48 : vector<8x1152xf32>
    %c0_15 = arith.constant 0 : index
    %c0_16 = arith.constant 0 : index
    %c0_17 = arith.constant 0 : index
    %50 = vector.load %arg4[%c0_15, %c0_16, %c0_17] : memref<1x8x1152xf32, #tpu.memory_space<vmem>>, vector<1x8x1152xf32>
    %51 = vector.shape_cast %50 : vector<1x8x1152xf32> to vector<8x1152xf32>
    %52 = vector.shape_cast %49 : vector<8x1152xf32> to vector<1x8x1152xf32>
    tpu.vector_store %arg4[%c0_15, %c0_16, %c0_17], %52 {strides = array<i32>} : memref<1x8x1152xf32, #tpu.memory_space<vmem>>, vector<1x8x1152xf32>,
    return
  }
  func.func @transform_0(%arg0: i32) -> (i32, i32, i32) {
    %c0_i32 = arith.constant 0 : i32
    %c0_i32_0 = arith.constant 0 : i32
    %c0_i32_1 = arith.constant 0 : i32
    return %arg0, %c0_i32, %c0_i32_0 : i32, i32, i32
  }
  func.func @transform_1(%arg0: i32) -> (i32, i32, i32) {
    %c0_i32 = arith.constant 0 : i32
    %c0_i32_0 = arith.constant 0 : i32
    %c0_i32_1 = arith.constant 0 : i32
    %c0_i32_2 = arith.constant 0 : i32
    return %c0_i32, %c0_i32_0, %c0_i32_1 : i32, i32, i32
  }
  func.func @transform_2(%arg0: i32) -> (i32, i32) {
    %c0_i32 = arith.constant 0 : i32
    %c0_i32_0 = arith.constant 0 : i32
    %c0_i32_1 = arith.constant 0 : i32
    return %c0_i32, %c0_i32_0 : i32, i32
  }
  func.func @transform_3(%arg0: i32) -> (i32, i32, i32) {
    %c0_i32 = arith.constant 0 : i32
    %c0_i32_0 = arith.constant 0 : i32
    %c0_i32_1 = arith.constant 0 : i32
    return %arg0, %c0_i32, %c0_i32_0 : i32, i32, i32
  }
}

</mosaic_0001>

<llo_original>
// kernel: tpu_custom_call.1
$region0: #{tpu_custom_call.1}
  #allocation0 [shape = 'u32[]', space=smem, size = 0x4, offset = 0x4, fixed_abs, tag = 'smem constant byte address 0x4 - core index']
  #allocation1 [shape = 'u32[144,128]{1,0:T(1,128)}', space=vmem, size = 0x12000, scoped, tag = 'internal scratch']
  %s0 = inlined_call_operand.vmem [shape: bf16[2,4,1280], index: 0, kind: input, shape index: {}]
  %s1 = inlined_call_operand.vmem [shape: bf16[9,8,4], index: 1, kind: input, shape index: {}]
  %s2 = inlined_call_operand.vmem [shape: f32[8,1], index: 2, kind: input, shape index: {}]
  %s3 = inlined_call_operand.hbm [shape: f32[2,8,1152], index: 3, kind: output, shape index: {}]
  %s4 = sld [smem:[#allocation0]]
  $region45: #{tpu_custom_call.1} parent=0
    _
  %s6 = ssub.s32 1, %s4
  %s7 = scalar_select 0, %s6, %s4
  $region1: #{tpu_custom_call.1} parent=0
    #allocation2 [shape = 'u8[73728]{0}', space=vmem, size = 0x12000, scoped, tag = 'output window, operand 0']
    #allocation3 [shape = 's32[2]{0}', space=sflag, size = 0x8, scoped, tag = 'scoped memory for tpu_custom_call.1']
    %8 = vsyncpa [#allocation3], 0
    %s9 = scalar_lea.sflag [#allocation3], 1
    %10 = vsyncpa %s9, 0
    loop: start=0, step=1, limit=4
    $region2: #{tpu_custom_call.1} parent=1 // loop_pre_header
      _
    $region3: #{tpu_custom_call.1} parent=1 // loop_header
      %s12 = sphi 0, %s16
      %p13 = scmp.ge.s32.totalorder %s12, 4
      %s22 = sphi 0, %s24
      %s25 = sphi 0, %s22
      %s26 = sphi 0, %s25
      %s42 = sphi 0, %s26
      %s46 = sphi 0, %s46
      %s48 = sphi 0, %s46
      %s49 = sphi 0, %s48
      %s63 = sphi 0, %s49
      %s67 = sphi 0, %s67
      %s69 = sphi 0, %s67
      %s70 = sphi 0, %s69
      %s84 = sphi 0, %s70
      %s90 = sphi 0, %s92
      %s93 = sphi 0, %s90
      %s94 = sphi 0, %s93
      %s110 = sphi 0, %s94
    $region4: #{tpu_custom_call.1} parent=1 // loop_header_branch
      %15 = sbr.rel (%p13) target = $region8
    $region5: #{tpu_custom_call.1} parent=1 // loop_body
      %s17 = ssub.s32 %s12, 1
      %s18 = ssub.s32 %s12, 2
      %s19 = sadd.s32 %s12, 1
      %s20 = ssub.s32 %s12, %s19
      %p21 = scmp.eq.s32.totalorder %s20, 0
      %s23 = sadd.s32 %s22, 1
      %s24 = scalar_select %p21, %s22, %s23
      %p27 = pneg %p21
      %p28 = scmp.eq.s32.totalorder %s12, 1
      %p29 = por %p27, %p28
      %p30 = scmp.ne.s32.totalorder %s22, %s25
      %p31 = scmp.eq.s32.totalorder %s12, 0
      %p32 = por %p30, %p31
      %p33 = scmp.ne.s32.totalorder %s22, %s25
      %p34 = scmp.eq.s32.totalorder %s17, 1
      %p35 = por %p33, %p34
      %p36 = scmp.ne.s32.totalorder %s25, %s26
      %p37 = scmp.eq.s32.totalorder %s17, 0
      %p38 = por %p36, %p37
      %p39 = scmp.ne.s32.totalorder %s25, %s26
      %p40 = scmp.eq.s32.totalorder %s18, 1
      %p41 = por %p39, %p40
      %p43 = scmp.ne.s32.totalorder %s26, %s42
      %p44 = scmp.eq.s32.totalorder %s18, 0
      %p45 = por %p43, %p44
      %s47 = sadd.s32 %s46, 1
      %p50 = scmp.eq.s32.totalorder %s12, 1
      %p51 = scmp.ne.s32.totalorder %s46, %s48
      %p52 = scmp.eq.s32.totalorder %s12, 0
      %p53 = por %p51, %p52
      %p54 = scmp.ne.s32.totalorder %s46, %s48
      %p55 = scmp.eq.s32.totalorder %s17, 1
      %p56 = por %p54, %p55
      %p57 = scmp.ne.s32.totalorder %s48, %s49
      %p58 = scmp.eq.s32.totalorder %s17, 0
      %p59 = por %p57, %p58
      %p60 = scmp.ne.s32.totalorder %s48, %s49
      %p61 = scmp.eq.s32.totalorder %s18, 1
      %p62 = por %p60, %p61
      %p64 = scmp.ne.s32.totalorder %s49, %s63
      %p65 = scmp.eq.s32.totalorder %s18, 0
      %p66 = por %p64, %p65
      %s68 = sadd.s32 %s67, 1
      %p71 = scmp.eq.s32.totalorder %s12, 1
      %p72 = scmp.ne.s32.totalorder %s67, %s69
      %p73 = scmp.eq.s32.totalorder %s12, 0
      %p74 = por %p72, %p73
      %p75 = scmp.ne.s32.totalorder %s67, %s69
      %p76 = scmp.eq.s32.totalorder %s17, 1
      %p77 = por %p75, %p76
      %p78 = scmp.ne.s32.totalorder %s69, %s70
      %p79 = scmp.eq.s32.totalorder %s17, 0
      %p80 = por %p78, %p79
      %p81 = scmp.ne.s32.totalorder %s69, %s70
      %p82 = scmp.eq.s32.totalorder %s18, 1
      %p83 = por %p81, %p82
      %p85 = scmp.ne.s32.totalorder %s70, %s84
      %p86 = scmp.eq.s32.totalorder %s18, 0
      %p87 = por %p85, %p86
      %s88 = ssub.s32 %s12, %s19
      %p89 = scmp.eq.s32.totalorder %s88, 0
      %s91 = sadd.s32 %s90, 1
      %s92 = scalar_select %p89, %s90, %s91
      %p95 = pneg %p89
      %p96 = scmp.eq.s32.totalorder %s12, 1
      %p97 = por %p95, %p96
      %p98 = scmp.ne.s32.totalorder %s90, %s93
      %p99 = scmp.eq.s32.totalorder %s12, 0
      %p100 = por %p98, %p99
      %p101 = scmp.ne.s32.totalorder %s90, %s93
      %p102 = scmp.eq.s32.totalorder %s17, 1
      %p103 = por %p101, %p102
      %p104 = scmp.ne.s32.totalorder %s93, %s94
      %p105 = scmp.eq.s32.totalorder %s17, 0
      %p106 = por %p104, %p105
      %p107 = scmp.ne.s32.totalorder %s93, %s94
      %p108 = scmp.eq.s32.totalorder %s18, 1
      %p109 = por %p107, %p108
      %p111 = scmp.ne.s32.totalorder %s94, %s110
      %p112 = scmp.eq.s32.totalorder %s18, 0
      %p113 = por %p111, %p112
      %p114 = scmp.le.s32.totalorder 1, %s12
      %p115 = scmp.lt.s32.totalorder %s12, 3
      %p116 = pnand %p114, %p115
      %p117 = pneg %p116
      // Predicated region
      $region9: #{tpu_custom_call.1} parent=5 // pred_check
        _
      $region10: #{tpu_custom_call.1} parent=5 // pred_check_branch
        %119 = sbr.rel (%p116) target = $region12
      $region11: #{tpu_custom_call.1} parent=5 // pred_region
        %s120 = ssub.s32 %s12, 1
        // Predicated region
        $region13: #{tpu_custom_call.1} parent=11 // pred_check
          %p121 = pneg %p59
        $region14: #{tpu_custom_call.1} parent=11 // pred_check_branch
          %123 = sbr.rel (%p121) target = $region16
        $region15: #{tpu_custom_call.1} parent=11 // pred_region
          _
        $region16: #{tpu_custom_call.1} parent=11 // pred_fallthru
          _
        // Predicated region
        $region17: #{tpu_custom_call.1} parent=11 // pred_check
          %p124 = pneg %p80
        $region18: #{tpu_custom_call.1} parent=11 // pred_check_branch
          %126 = sbr.rel (%p124) target = $region20
        $region19: #{tpu_custom_call.1} parent=11 // pred_region
          _
        $region20: #{tpu_custom_call.1} parent=11 // pred_fallthru
          _
      $region12: #{tpu_custom_call.1} parent=5 // pred_fallthru
        _
      %p127 = scmp.lt.s32.totalorder %s12, 2
      // Predicated region
      $region21: #{tpu_custom_call.1} parent=5 // pred_check
        %p128 = pneg %p127
      $region22: #{tpu_custom_call.1} parent=5 // pred_check_branch
        %130 = sbr.rel (%p128) target = $region24
      $region23: #{tpu_custom_call.1} parent=5 // pred_region
        // Predicated region
        $region25: #{tpu_custom_call.1} parent=23 // pred_check
          %p131 = pneg %p32
        $region26: #{tpu_custom_call.1} parent=23 // pred_check_branch
          %133 = sbr.rel (%p131) target = $region28
        $region27: #{tpu_custom_call.1} parent=23 // pred_region
          %p134 = scmp.lt.s32.totalorder %s12, 1
          %s135 = scalar_select %p134, %s12, 1
          %s136 = smul.addr %s135, 10
          %s137 = smul.addr %s136, 2
          %s138 = scalar_lea.vmem %s0, %s137
        $region28: #{tpu_custom_call.1} parent=23 // pred_fallthru
          _
      $region24: #{tpu_custom_call.1} parent=5 // pred_fallthru
        _
      %p139 = scmp.le.s32.totalorder 1, %s12
      %p140 = scmp.lt.s32.totalorder %s12, 3
      %p141 = pnand %p139, %p140
      %p142 = pneg %p141
      // Predicated region
      $region29: #{tpu_custom_call.1} parent=5 // pred_check
        _
      $region30: #{tpu_custom_call.1} parent=5 // pred_check_branch
        %144 = sbr.rel (%p141) target = $region32
      $region31: #{tpu_custom_call.1} parent=5 // pred_region
        %s145 = ssub.s32 %s12, 1
        %p146 = scmp.lt.s32.totalorder %s17, 1
        %s147 = scalar_select %p146, %s17, 1
        %s148 = smul.addr %s147, 10
        %s149 = smul.addr %s148, 2
        %s150 = scalar_lea.vmem %s0, %s149
        %p151 = pneg %p38
        %p152 = pneg %p35
        %p153 = pneg %p59
        %p154 = pneg %p56
        %p155 = pneg %p80
        %p156 = pneg %p77
        %p157 = pneg %p106
        %p158 = pneg %p103
        %s159 = sand.u32 %s93, 1
        %s160 = scalar_lea.sflag [#allocation3], %s159
        %s161 = sand.u32 %s93, 1
        %s162 = smul.addr %s161, 72
        %s163 = scalar_lea.vmem [#allocation2], %s162
        %p164 = scmp.lt.s32.totalorder %s17, 1
        %s165 = scalar_select %p164, %s17, 1
        %s166 = smul.addr %s165, 10
        %s167 = smul.addr %s166, 2
        %s168 = scalar_lea.vmem %s0, %s167
        %v170 = vld [vmem:[%s168] sm:$0xff]
        %v171 = vld [vmem:[%s168 + $0x8] sm:$0xff]
        %v172 = vld [vmem:[%s168 + $0x10] sm:$0xf]
        %v173 = vld [vmem:[%s1] sm:$0xf]
        %v174 = vld [vmem:[%s1 + $0x4] sm:$0xf]
        %v175 = vld [vmem:[%s1 + $0x8] sm:$0xf]
        %v176 = vld [vmem:[%s1 + $0xc] sm:$0xf]
        %v177 = vld [vmem:[%s1 + $0x10] sm:$0xf]
        %v178 = vld [vmem:[%s1 + $0x14] sm:$0xf]
        %v179 = vld [vmem:[%s1 + $0x18] sm:$0xf]
        %v180 = vld [vmem:[%s1 + $0x1c] sm:$0xf]
        %v181 = vld [vmem:[%s1 + $0x20] sm:$0xf]
        %v185 = vcombine.high %v170, %v170
        %v187 = vunpack.c.l.s4 1983009808
        %v188 = vunpack.c.0.s8 %v187
        %v189 = vlaneseq
        %v190 = vshrl.u32 %v189, 7
        %v191 = vsub.s32 %v188, %v190
        %v192 = vrot.slane %v170, %v191
        %v194 = vunpack.c.l.s4 1983009808
        %v195 = vunpack.c.0.s8 %v194
        %v196 = vlaneseq
        %v197 = vshrl.u32 %v196, 7
        %v198 = vsub.s32 %v195, %v197
        %v199 = vrot.slane %v185, %v198
        %v200 = vcombine.high %v192, %v192
        %v201 = vcombine.high %v199, %v199
        %v202 = vcombine.high %v171, %v171
        %v204 = vunpack.c.l.s4 1983009808
        %v205 = vunpack.c.0.s8 %v204
        %v206 = vlaneseq
        %v207 = vshrl.u32 %v206, 7
        %v208 = vsub.s32 %v205, %v207
        %v209 = vrot.slane %v171, %v208
        %v211 = vunpack.c.l.s4 1983009808
        %v212 = vunpack.c.0.s8 %v211
        %v213 = vlaneseq
        %v214 = vshrl.u32 %v213, 7
        %v215 = vsub.s32 %v212, %v214
        %v216 = vrot.slane %v202, %v215
        %v217 = vcombine.high %v209, %v209
        %v218 = vcombine.high %v216, %v216
        %v220 = vunpack.c.l.s4 1983009808
        %v221 = vunpack.c.0.s8 %v220
        %v222 = vlaneseq
        %v223 = vshrl.u32 %v222, 7
        %v224 = vsub.s32 %v221, %v223
        %v225 = vrot.slane %v172, %v224
        %v226 = vcombine.high %v225, %v225
        %227 = vrot.lane.b32.xlu0 %v192, 127
        %v228 = vpop.permute.xlu0 %227
        %229 = vrot.lane.b32.xlu0 %v200, 127
        %v230 = vpop.permute.xlu0 %229
        %231 = vrot.lane.b32.xlu0 %v199, 127
        %v232 = vpop.permute.xlu0 %231
        %233 = vrot.lane.b32.xlu0 %v201, 127
        %v234 = vpop.permute.xlu0 %233
        %235 = vrot.lane.b32.xlu0 %v209, 127
        %v236 = vpop.permute.xlu0 %235
        %237 = vrot.lane.b32.xlu0 %v217, 127
        %v238 = vpop.permute.xlu0 %237
        %239 = vrot.lane.b32.xlu0 %v216, 127
        %v240 = vpop.permute.xlu0 %239
        %241 = vrot.lane.b32.xlu0 %v218, 127
        %v242 = vpop.permute.xlu0 %241
        %243 = vrot.lane.b32.xlu0 %v225, 127
        %v244 = vpop.permute.xlu0 %243
        %245 = vrot.lane.b32.xlu0 %v226, 127
        %v246 = vpop.permute.xlu0 %245
        %vm247 = vcmask 1039360
        %v248 = vsel %vm247, %v228, %v230
        %v249 = vsel %vm247, %v230, %v232
        %v250 = vsel %vm247, %v232, %v234
        %v251 = vsel %vm247, %v234, %v236
        %v252 = vsel %vm247, %v236, %v238
        %v253 = vsel %vm247, %v238, %v240
        %v254 = vsel %vm247, %v240, %v242
        %v255 = vsel %vm247, %v242, %v244
        %v256 = vsel %vm247, %v244, %v246
        %vm257 = vcmask 31744
        %v259 = vsel %vm257, %v174, 0
        %vm261 = vcmask 1041408
        %v263 = vsel %vm261, %v248, 0
        %v266 = vsel %vm261, %v249, 0
        %v269 = vsel %vm261, %v250, 0
        %v272 = vsel %vm261, %v251, 0
        %v275 = vsel %vm261, %v252, 0
        %v278 = vsel %vm261, %v253, 0
        %v281 = vsel %vm261, %v254, 0
        %v284 = vsel %vm261, %v255, 0
        %v287 = vsel %vm261, %v256, 0
        %289 = vmatprep.subr.bf16.mxu0 %v266
        %290 = vmatpush1.bf16.msra.mxu0 %v263
        %291 = vmatprep.subr.bf16.mxu0 0
        %292 = vmatpush1.bf16.msra.mxu0 0
        %293 = vmatprep.subr.bf16.mxu0 0
        %294 = vmatpush1.bf16.msra.mxu0 0
        %295 = vmatprep.subr.bf16.mxu0 0
        %296 = vmatpush1.bf16.msra.mxu0 0
        %297 = vmatprep.subr.bf16.mxu0 0
        %298 = vmatpush1.bf16.msra.mxu0 0
        %299 = vmatprep.subr.bf16.mxu0 0
        %300 = vmatpush1.bf16.msra.mxu0 0
        %301 = vmatprep.subr.bf16.mxu0 0
        %302 = vmatpush1.bf16.msra.mxu0 0
        %303 = vmatprep.subr.bf16.mxu0 0
        %304 = vmatpush1.bf16.msra.mxu0 0
        %305 = vmatprep.subr.bf16.mxu0 0
        %306 = vmatpush1.bf16.msra.mxu0 0
        %307 = vmatprep.subr.bf16.mxu0 0
        %308 = vmatpush1.bf16.msra.mxu0 0
        %309 = vmatprep.subr.bf16.mxu0 0
        %310 = vmatpush1.bf16.msra.mxu0 0
        %311 = vmatprep.subr.bf16.mxu0 0
        %312 = vmatpush1.bf16.msra.mxu0 0
        %313 = vmatprep.subr.bf16.mxu0 0
        %314 = vmatpush1.bf16.msra.mxu0 0
        %315 = vmatprep.subr.bf16.mxu0 0
        %316 = vmatpush1.bf16.msra.mxu0 0
        %317 = vmatprep.subr.bf16.mxu0 0
        %318 = vmatpush1.bf16.msra.mxu0 0
        %319 = vmatprep.subr.bf16.mxu0 0
        %320 = vmatpush1.bf16.msra.mxu0 0
        %321 = vmatprep.mubr.bf16.mxu0 0
        %322 = vmatmul.mubr.bf16.gmra.mrb[0].mxu0 %v259
        %v323 = vpop.f32.mrb[0].mxu0
        %v324 = vadd.f32 0.0, %v323
        %v325 = vpop.f32.mrb[0].mxu0
        %v326 = vadd.f32 0.0, %v325
        %v327 = vpop.f32.mrb[0].mxu0
        %v328 = vpop.f32.mrb[0].mxu0
        %329 = vdwg.mxu0
        %330 = vmatprep.subr.bf16.mxu0 %v272
        %331 = vmatpush1.bf16.msra.mxu0 %v269
        %332 = vmatprep.subr.bf16.mxu0 0
        %333 = vmatpush1.bf16.msra.mxu0 0
        %334 = vmatprep.subr.bf16.mxu0 0
        %335 = vmatpush1.bf16.msra.mxu0 0
        %336 = vmatprep.subr.bf16.mxu0 0
        %337 = vmatpush1.bf16.msra.mxu0 0
        %338 = vmatprep.subr.bf16.mxu0 0
        %339 = vmatpush1.bf16.msra.mxu0 0
        %340 = vmatprep.subr.bf16.mxu0 0
        %341 = vmatpush1.bf16.msra.mxu0 0
        %342 = vmatprep.subr.bf16.mxu0 0
        %343 = vmatpush1.bf16.msra.mxu0 0
        %344 = vmatprep.subr.bf16.mxu0 0
        %345 = vmatpush1.bf16.msra.mxu0 0
        %346 = vmatprep.subr.bf16.mxu0 0
        %347 = vmatpush1.bf16.msra.mxu0 0
        %348 = vmatprep.subr.bf16.mxu0 0
        %349 = vmatpush1.bf16.msra.mxu0 0
        %350 = vmatprep.subr.bf16.mxu0 0
        %351 = vmatpush1.bf16.msra.mxu0 0
        %352 = vmatprep.subr.bf16.mxu0 0
        %353 = vmatpush1.bf16.msra.mxu0 0
        %354 = vmatprep.subr.bf16.mxu0 0
        %355 = vmatpush1.bf16.msra.mxu0 0
        %356 = vmatprep.subr.bf16.mxu0 0
        %357 = vmatpush1.bf16.msra.mxu0 0
        %358 = vmatprep.subr.bf16.mxu0 0
        %359 = vmatpush1.bf16.msra.mxu0 0
        %360 = vmatprep.subr.bf16.mxu0 0
        %361 = vmatpush1.bf16.msra.mxu0 0
        %362 = vmatprep.mubr.bf16.mxu0 0
        %363 = vmatmul.mubr.bf16.gmra.mrb[0].mxu0 %v259
        %v364 = vpop.f32.mrb[0].mxu0
        %v365 = vadd.f32 0.0, %v364
        %v366 = vpop.f32.mrb[0].mxu0
        %v367 = vadd.f32 0.0, %v366
        %v368 = vpop.f32.mrb[0].mxu0
        %v369 = vpop.f32.mrb[0].mxu0
        %370 = vdwg.mxu0
        %371 = vmatprep.subr.bf16.mxu0 %v278
        %372 = vmatpush1.bf16.msra.mxu0 %v275
        %373 = vmatprep.subr.bf16.mxu0 0
        %374 = vmatpush1.bf16.msra.mxu0 0
        %375 = vmatprep.subr.bf16.mxu0 0
        %376 = vmatpush1.bf16.msra.mxu0 0
        %377 = vmatprep.subr.bf16.mxu0 0
        %378 = vmatpush1.bf16.msra.mxu0 0
        %379 = vmatprep.subr.bf16.mxu0 0
        %380 = vmatpush1.bf16.msra.mxu0 0
        %381 = vmatprep.subr.bf16.mxu0 0
        %382 = vmatpush1.bf16.msra.mxu0 0
        %383 = vmatprep.subr.bf16.mxu0 0
        %384 = vmatpush1.bf16.msra.mxu0 0
        %385 = vmatprep.subr.bf16.mxu0 0
        %386 = vmatpush1.bf16.msra.mxu0 0
        %387 = vmatprep.subr.bf16.mxu0 0
        %388 = vmatpush1.bf16.msra.mxu0 0
        %389 = vmatprep.subr.bf16.mxu0 0
        %390 = vmatpush1.bf16.msra.mxu0 0
        %391 = vmatprep.subr.bf16.mxu0 0
        %392 = vmatpush1.bf16.msra.mxu0 0
        %393 = vmatprep.subr.bf16.mxu0 0
        %394 = vmatpush1.bf16.msra.mxu0 0
        %395 = vmatprep.subr.bf16.mxu0 0
        %396 = vmatpush1.bf16.msra.mxu0 0
        %397 = vmatprep.subr.bf16.mxu0 0
        %398 = vmatpush1.bf16.msra.mxu0 0
        %399 = vmatprep.subr.bf16.mxu0 0
        %400 = vmatpush1.bf16.msra.mxu0 0
        %401 = vmatprep.subr.bf16.mxu0 0
        %402 = vmatpush1.bf16.msra.mxu0 0
        %403 = vmatprep.mubr.bf16.mxu0 0
        %404 = vmatmul.mubr.bf16.gmra.mrb[0].mxu0 %v259
        %v405 = vpop.f32.mrb[0].mxu0
        %v406 = vadd.f32 0.0, %v405
        %v407 = vpop.f32.mrb[0].mxu0
        %v408 = vadd.f32 0.0, %v407
        %v409 = vpop.f32.mrb[0].mxu0
        %v410 = vpop.f32.mrb[0].mxu0
        %411 = vdwg.mxu0
        %412 = vmatprep.subr.bf16.mxu0 %v284
        %413 = vmatpush1.bf16.msra.mxu0 %v281
        %414 = vmatprep.subr.bf16.mxu0 0
        %415 = vmatpush1.bf16.msra.mxu0 0
        %416 = vmatprep.subr.bf16.mxu0 0
        %417 = vmatpush1.bf16.msra.mxu0 0
        %418 = vmatprep.subr.bf16.mxu0 0
        %419 = vmatpush1.bf16.msra.mxu0 0
        %420 = vmatprep.subr.bf16.mxu0 0
        %421 = vmatpush1.bf16.msra.mxu0 0
        %422 = vmatprep.subr.bf16.mxu0 0
        %423 = vmatpush1.bf16.msra.mxu0 0
        %424 = vmatprep.subr.bf16.mxu0 0
        %425 = vmatpush1.bf16.msra.mxu0 0
        %426 = vmatprep.subr.bf16.mxu0 0
        %427 = vmatpush1.bf16.msra.mxu0 0
        %428 = vmatprep.subr.bf16.mxu0 0
        %429 = vmatpush1.bf16.msra.mxu0 0
        %430 = vmatprep.subr.bf16.mxu0 0
        %431 = vmatpush1.bf16.msra.mxu0 0
        %432 = vmatprep.subr.bf16.mxu0 0
        %433 = vmatpush1.bf16.msra.mxu0 0
        %434 = vmatprep.subr.bf16.mxu0 0
        %435 = vmatpush1.bf16.msra.mxu0 0
        %436 = vmatprep.subr.bf16.mxu0 0
        %437 = vmatpush1.bf16.msra.mxu0 0
        %438 = vmatprep.subr.bf16.mxu0 0
        %439 = vmatpush1.bf16.msra.mxu0 0
        %440 = vmatprep.subr.bf16.mxu0 0
        %441 = vmatpush1.bf16.msra.mxu0 0
        %442 = vmatprep.subr.bf16.mxu0 0
        %443 = vmatpush1.bf16.msra.mxu0 0
        %444 = vmatprep.mubr.bf16.mxu0 0
        %445 = vmatmul.mubr.bf16.gmra.mrb[0].mxu0 %v259
        %v446 = vpop.f32.mrb[0].mxu0
        %v447 = vadd.f32 0.0, %v446
        %v448 = vpop.f32.mrb[0].mxu0
        %v449 = vadd.f32 0.0, %v448
        %v450 = vpop.f32.mrb[0].mxu0
        %v451 = vpop.f32.mrb[0].mxu0
        %452 = vdwg.mxu0
        %453 = vmatprep.subr.bf16.mxu0 0
        %454 = vmatpush1.bf16.msra.mxu0 %v287
        %455 = vmatprep.subr.bf16.mxu0 0
        %456 = vmatpush1.bf16.msra.mxu0 0
        %457 = vmatprep.subr.bf16.mxu0 0
        %458 = vmatpush1.bf16.msra.mxu0 0
        %459 = vmatprep.subr.bf16.mxu0 0
        %460 = vmatpush1.bf16.msra.mxu0 0
        %461 = vmatprep.subr.bf16.mxu0 0
        %462 = vmatpush1.bf16.msra.mxu0 0
        %463 = vmatprep.subr.bf16.mxu0 0
        %464 = vmatpush1.bf16.msra.mxu0 0
        %465 = vmatprep.subr.bf16.mxu0 0
        %466 = vmatpush1.bf16.msra.mxu0 0
        %467 = vmatprep.subr.bf16.mxu0 0
        %468 = vmatpush1.bf16.msra.mxu0 0
        %469 = vmatprep.subr.bf16.mxu0 0
        %470 = vmatpush1.bf16.msra.mxu0 0
        %471 = vmatprep.subr.bf16.mxu0 0
        %472 = vmatpush1.bf16.msra.mxu0 0
        %473 = vmatprep.subr.bf16.mxu0 0
        %474 = vmatpush1.bf16.msra.mxu0 0
        %475 = vmatprep.subr.bf16.mxu0 0
        %476 = vmatpush1.bf16.msra.mxu0 0
        %477 = vmatprep.subr.bf16.mxu0 0
        %478 = vmatpush1.bf16.msra.mxu0 0
        %479 = vmatprep.subr.bf16.mxu0 0
        %480 = vmatpush1.bf16.msra.mxu0 0
        %481 = vmatprep.subr.bf16.mxu0 0
        %482 = vmatpush1.bf16.msra.mxu0 0
        %483 = vmatprep.subr.bf16.mxu0 0
        %484 = vmatpush1.bf16.msra.mxu0 0
        %485 = vmatprep.mubr.bf16.mxu0 0
        %486 = vmatmul.mubr.bf16.gmra.mrb[0].mxu0 %v259
        %v487 = vpop.f32.mrb[0].mxu0
        %v488 = vadd.f32 0.0, %v487
        %v489 = vpop.f32.mrb[0].mxu0
        %v490 = vpop.f32.mrb[0].mxu0
        %v491 = vpop.f32.mrb[0].mxu0
        %492 = vdwg.mxu0
        %v494 = vsel %vm257, %v173, 0
        %v497 = vsel %vm261, %v192, 0
        %v500 = vsel %vm261, %v200, 0
        %v503 = vsel %vm261, %v199, 0
        %v506 = vsel %vm261, %v201, 0
        %v509 = vsel %vm261, %v209, 0
        %v512 = vsel %vm261, %v217, 0
        %v515 = vsel %vm261, %v216, 0
        %v518 = vsel %vm261, %v218, 0
        %v521 = vsel %vm261, %v225, 0
        %523 = vmatprep.subr.bf16.mxu0 %v500
        %524 = vmatpush1.bf16.msra.mxu0 %v497
        %525 = vmatprep.subr.bf16.mxu0 0
        %526 = vmatpush1.bf16.msra.mxu0 0
        %527 = vmatprep.subr.bf16.mxu0 0
        %528 = vmatpush1.bf16.msra.mxu0 0
        %529 = vmatprep.subr.bf16.mxu0 0
        %530 = vmatpush1.bf16.msra.mxu0 0
        %531 = vmatprep.subr.bf16.mxu0 0
        %532 = vmatpush1.bf16.msra.mxu0 0
        %533 = vmatprep.subr.bf16.mxu0 0
        %534 = vmatpush1.bf16.msra.mxu0 0
        %535 = vmatprep.subr.bf16.mxu0 0
        %536 = vmatpush1.bf16.msra.mxu0 0
        %537 = vmatprep.subr.bf16.mxu0 0
        %538 = vmatpush1.bf16.msra.mxu0 0
        %539 = vmatprep.subr.bf16.mxu0 0
        %540 = vmatpush1.bf16.msra.mxu0 0
        %541 = vmatprep.subr.bf16.mxu0 0
        %542 = vmatpush1.bf16.msra.mxu0 0
        %543 = vmatprep.subr.bf16.mxu0 0
        %544 = vmatpush1.bf16.msra.mxu0 0
        %545 = vmatprep.subr.bf16.mxu0 0
        %546 = vmatpush1.bf16.msra.mxu0 0
        %547 = vmatprep.subr.bf16.mxu0 0
        %548 = vmatpush1.bf16.msra.mxu0 0
        %549 = vmatprep.subr.bf16.mxu0 0
        %550 = vmatpush1.bf16.msra.mxu0 0
        %551 = vmatprep.subr.bf16.mxu0 0
        %552 = vmatpush1.bf16.msra.mxu0 0
        %553 = vmatprep.subr.bf16.mxu0 0
        %554 = vmatpush1.bf16.msra.mxu0 0
        %555 = vmatprep.mubr.bf16.mxu0 0
        %556 = vmatmul.mubr.bf16.gmra.mrb[0].mxu0 %v494
        %v557 = vpop.f32.mrb[0].mxu0
        %v558 = vadd.f32 %v324, %v557
        %v559 = vpop.f32.mrb[0].mxu0
        %v560 = vadd.f32 %v326, %v559
        %v561 = vpop.f32.mrb[0].mxu0
        %v562 = vpop.f32.mrb[0].mxu0
        %563 = vdwg.mxu0
        %564 = vmatprep.subr.bf16.mxu0 %v506
        %565 = vmatpush1.bf16.msra.mxu0 %v503
        %566 = vmatprep.subr.bf16.mxu0 0
        %567 = vmatpush1.bf16.msra.mxu0 0
        %568 = vmatprep.subr.bf16.mxu0 0
        %569 = vmatpush1.bf16.msra.mxu0 0
        %570 = vmatprep.subr.bf16.mxu0 0
        %571 = vmatpush1.bf16.msra.mxu0 0
        %572 = vmatprep.subr.bf16.mxu0 0
        %573 = vmatpush1.bf16.msra.mxu0 0
        %574 = vmatprep.subr.bf16.mxu0 0
        %575 = vmatpush1.bf16.msra.mxu0 0
        %576 = vmatprep.subr.bf16.mxu0 0
        %577 = vmatpush1.bf16.msra.mxu0 0
        %578 = vmatprep.subr.bf16.mxu0 0
        %579 = vmatpush1.bf16.msra.mxu0 0
        %580 = vmatprep.subr.bf16.mxu0 0
        %581 = vmatpush1.bf16.msra.mxu0 0
        %582 = vmatprep.subr.bf16.mxu0 0
        %583 = vmatpush1.bf16.msra.mxu0 0
        %584 = vmatprep.subr.bf16.mxu0 0
        %585 = vmatpush1.bf16.msra.mxu0 0
        %586 = vmatprep.subr.bf16.mxu0 0
        %587 = vmatpush1.bf16.msra.mxu0 0
        %588 = vmatprep.subr.bf16.mxu0 0
        %589 = vmatpush1.bf16.msra.mxu0 0
        %590 = vmatprep.subr.bf16.mxu0 0
        %591 = vmatpush1.bf16.msra.mxu0 0
        %592 = vmatprep.subr.bf16.mxu0 0
        %593 = vmatpush1.bf16.msra.mxu0 0
        %594 = vmatprep.subr.bf16.mxu0 0
        %595 = vmatpush1.bf16.msra.mxu0 0
        %596 = vmatprep.mubr.bf16.mxu0 0
        %597 = vmatmul.mubr.bf16.gmra.mrb[0].mxu0 %v494
        %v598 = vpop.f32.mrb[0].mxu0
        %v599 = vadd.f32 %v365, %v598
        %v600 = vpop.f32.mrb[0].mxu0
        %v601 = vadd.f32 %v367, %v600
        %v602 = vpop.f32.mrb[0].mxu0
        %v603 = vpop.f32.mrb[0].mxu0
        %604 = vdwg.mxu0
        %605 = vmatprep.subr.bf16.mxu0 %v512
        %606 = vmatpush1.bf16.msra.mxu0 %v509
        %607 = vmatprep.subr.bf16.mxu0 0
        %608 = vmatpush1.bf16.msra.mxu0 0
        %609 = vmatprep.subr.bf16.mxu0 0
        %610 = vmatpush1.bf16.msra.mxu0 0
        %611 = vmatprep.subr.bf16.mxu0 0
        %612 = vmatpush1.bf16.msra.mxu0 0
        %613 = vmatprep.subr.bf16.mxu0 0
        %614 = vmatpush1.bf16.msra.mxu0 0
        %615 = vmatprep.subr.bf16.mxu0 0
        %616 = vmatpush1.bf16.msra.mxu0 0
        %617 = vmatprep.subr.bf16.mxu0 0
        %618 = vmatpush1.bf16.msra.mxu0 0
        %619 = vmatprep.subr.bf16.mxu0 0
        %620 = vmatpush1.bf16.msra.mxu0 0
        %621 = vmatprep.subr.bf16.mxu0 0
        %622 = vmatpush1.bf16.msra.mxu0 0
        %623 = vmatprep.subr.bf16.mxu0 0
        %624 = vmatpush1.bf16.msra.mxu0 0
        %625 = vmatprep.subr.bf16.mxu0 0
        %626 = vmatpush1.bf16.msra.mxu0 0
        %627 = vmatprep.subr.bf16.mxu0 0
        %628 = vmatpush1.bf16.msra.mxu0 0
        %629 = vmatprep.subr.bf16.mxu0 0
        %630 = vmatpush1.bf16.msra.mxu0 0
        %631 = vmatprep.subr.bf16.mxu0 0
        %632 = vmatpush1.bf16.msra.mxu0 0
        %633 = vmatprep.subr.bf16.mxu0 0
        %634 = vmatpush1.bf16.msra.mxu0 0
        %635 = vmatprep.subr.bf16.mxu0 0
        %636 = vmatpush1.bf16.msra.mxu0 0
        %637 = vmatprep.mubr.bf16.mxu0 0
        %638 = vmatmul.mubr.bf16.gmra.mrb[0].mxu0 %v494
        %v639 = vpop.f32.mrb[0].mxu0
        %v640 = vadd.f32 %v406, %v639
        %v641 = vpop.f32.mrb[0].mxu0
        %v642 = vadd.f32 %v408, %v641
        %v643 = vpop.f32.mrb[0].mxu0
        %v644 = vpop.f32.mrb[0].mxu0
        %645 = vdwg.mxu0
        %646 = vmatprep.subr.bf16.mxu0 %v518
        %647 = vmatpush1.bf16.msra.mxu0 %v515
        %648 = vmatprep.subr.bf16.mxu0 0
        %649 = vmatpush1.bf16.msra.mxu0 0
        %650 = vmatprep.subr.bf16.mxu0 0
        %651 = vmatpush1.bf16.msra.mxu0 0
        %652 = vmatprep.subr.bf16.mxu0 0
        %653 = vmatpush1.bf16.msra.mxu0 0
        %654 = vmatprep.subr.bf16.mxu0 0
        %655 = vmatpush1.bf16.msra.mxu0 0
        %656 = vmatprep.subr.bf16.mxu0 0
        %657 = vmatpush1.bf16.msra.mxu0 0
        %658 = vmatprep.subr.bf16.mxu0 0
        %659 = vmatpush1.bf16.msra.mxu0 0
        %660 = vmatprep.subr.bf16.mxu0 0
        %661 = vmatpush1.bf16.msra.mxu0 0
        %662 = vmatprep.subr.bf16.mxu0 0
        %663 = vmatpush1.bf16.msra.mxu0 0
        %664 = vmatprep.subr.bf16.mxu0 0
        %665 = vmatpush1.bf16.msra.mxu0 0
        %666 = vmatprep.subr.bf16.mxu0 0
        %667 = vmatpush1.bf16.msra.mxu0 0
        %668 = vmatprep.subr.bf16.mxu0 0
        %669 = vmatpush1.bf16.msra.mxu0 0
        %670 = vmatprep.subr.bf16.mxu0 0
        %671 = vmatpush1.bf16.msra.mxu0 0
        %672 = vmatprep.subr.bf16.mxu0 0
        %673 = vmatpush1.bf16.msra.mxu0 0
        %674 = vmatprep.subr.bf16.mxu0 0
        %675 = vmatpush1.bf16.msra.mxu0 0
        %676 = vmatprep.subr.bf16.mxu0 0
        %677 = vmatpush1.bf16.msra.mxu0 0
        %678 = vmatprep.mubr.bf16.mxu0 0
        %679 = vmatmul.mubr.bf16.gmra.mrb[0].mxu0 %v494
        %v680 = vpop.f32.mrb[0].mxu0
        %v681 = vadd.f32 %v447, %v680
        %v682 = vpop.f32.mrb[0].mxu0
        %v683 = vadd.f32 %v449, %v682
        %v684 = vpop.f32.mrb[0].mxu0
        %v685 = vpop.f32.mrb[0].mxu0
        %686 = vdwg.mxu0
        %687 = vmatprep.subr.bf16.mxu0 0
        %688 = vmatpush1.bf16.msra.mxu0 %v521
        %689 = vmatprep.subr.bf16.mxu0 0
        %690 = vmatpush1.bf16.msra.mxu0 0
        %691 = vmatprep.subr.bf16.mxu0 0
        %692 = vmatpush1.bf16.msra.mxu0 0
        %693 = vmatprep.subr.bf16.mxu0 0
        %694 = vmatpush1.bf16.msra.mxu0 0
        %695 = vmatprep.subr.bf16.mxu0 0
        %696 = vmatpush1.bf16.msra.mxu0 0
        %697 = vmatprep.subr.bf16.mxu0 0
        %698 = vmatpush1.bf16.msra.mxu0 0
        %699 = vmatprep.subr.bf16.mxu0 0
        %700 = vmatpush1.bf16.msra.mxu0 0
        %701 = vmatprep.subr.bf16.mxu0 0
        %702 = vmatpush1.bf16.msra.mxu0 0
        %703 = vmatprep.subr.bf16.mxu0 0
        %704 = vmatpush1.bf16.msra.mxu0 0
        %705 = vmatprep.subr.bf16.mxu0 0
        %706 = vmatpush1.bf16.msra.mxu0 0
        %707 = vmatprep.subr.bf16.mxu0 0
        %708 = vmatpush1.bf16.msra.mxu0 0
        %709 = vmatprep.subr.bf16.mxu0 0
        %710 = vmatpush1.bf16.msra.mxu0 0
        %711 = vmatprep.subr.bf16.mxu0 0
        %712 = vmatpush1.bf16.msra.mxu0 0
        %713 = vmatprep.subr.bf16.mxu0 0
        %714 = vmatpush1.bf16.msra.mxu0 0
        %715 = vmatprep.subr.bf16.mxu0 0
        %716 = vmatpush1.bf16.msra.mxu0 0
        %717 = vmatprep.subr.bf16.mxu0 0
        %718 = vmatpush1.bf16.msra.mxu0 0
        %719 = vmatprep.mubr.bf16.mxu0 0
        %720 = vmatmul.mubr.bf16.gmra.mrb[0].mxu0 %v494
        %v721 = vpop.f32.mrb[0].mxu0
        %v722 = vadd.f32 %v488, %v721
        %v723 = vpop.f32.mrb[0].mxu0
        %v724 = vpop.f32.mrb[0].mxu0
        %v725 = vpop.f32.mrb[0].mxu0
        %726 = vdwg.mxu0
        %727 = vrot.lane.b32.xlu0 %v192, 126
        %v728 = vpop.permute.xlu0 %727
        %729 = vrot.lane.b32.xlu0 %v200, 126
        %v730 = vpop.permute.xlu0 %729
        %731 = vrot.lane.b32.xlu0 %v199, 126
        %v732 = vpop.permute.xlu0 %731
        %733 = vrot.lane.b32.xlu0 %v201, 126
        %v734 = vpop.permute.xlu0 %733
        %735 = vrot.lane.b32.xlu0 %v209, 126
        %v736 = vpop.permute.xlu0 %735
        %737 = vrot.lane.b32.xlu0 %v217, 126
        %v738 = vpop.permute.xlu0 %737
        %739 = vrot.lane.b32.xlu0 %v216, 126
        %v740 = vpop.permute.xlu0 %739
        %741 = vrot.lane.b32.xlu0 %v218, 126
        %v742 = vpop.permute.xlu0 %741
        %743 = vrot.lane.b32.xlu0 %v225, 126
        %v744 = vpop.permute.xlu0 %743
        %745 = vrot.lane.b32.xlu0 %v226, 126
        %v746 = vpop.permute.xlu0 %745
        %vm747 = vcmask 1031168
        %v748 = vsel %vm747, %v728, %v730
        %v749 = vsel %vm747, %v730, %v732
        %v750 = vsel %vm747, %v732, %v734
        %v751 = vsel %vm747, %v734, %v736
        %v752 = vsel %vm747, %v736, %v738
        %v753 = vsel %vm747, %v738, %v740
        %v754 = vsel %vm747, %v740, %v742
        %v755 = vsel %vm747, %v742, %v744
        %v756 = vsel %vm747, %v744, %v746
        %v758 = vsel %vm257, %v175, 0
        %v761 = vsel %vm261, %v748, 0
        %v764 = vsel %vm261, %v749, 0
        %v767 = vsel %vm261, %v750, 0
        %v770 = vsel %vm261, %v751, 0
        %v773 = vsel %vm261, %v752, 0
        %v776 = vsel %vm261, %v753, 0
        %v779 = vsel %vm261, %v754, 0
        %v782 = vsel %vm261, %v755, 0
        %v785 = vsel %vm261, %v756, 0
        %787 = vmatprep.subr.bf16.mxu0 %v764
        %788 = vmatpush1.bf16.msra.mxu0 %v761
        %789 = vmatprep.subr.bf16.mxu0 0
        %790 = vmatpush1.bf16.msra.mxu0 0
        %791 = vmatprep.subr.bf16.mxu0 0
        %792 = vmatpush1.bf16.msra.mxu0 0
        %793 = vmatprep.subr.bf16.mxu0 0
        %794 = vmatpush1.bf16.msra.mxu0 0
        %795 = vmatprep.subr.bf16.mxu0 0
        %796 = vmatpush1.bf16.msra.mxu0 0
        %797 = vmatprep.subr.bf16.mxu0 0
        %798 = vmatpush1.bf16.msra.mxu0 0
        %799 = vmatprep.subr.bf16.mxu0 0
        %800 = vmatpush1.bf16.msra.mxu0 0
        %801 = vmatprep.subr.bf16.mxu0 0
        %802 = vmatpush1.bf16.msra.mxu0 0
        %803 = vmatprep.subr.bf16.mxu0 0
        %804 = vmatpush1.bf16.msra.mxu0 0
        %805 = vmatprep.subr.bf16.mxu0 0
        %806 = vmatpush1.bf16.msra.mxu0 0
        %807 = vmatprep.subr.bf16.mxu0 0
        %808 = vmatpush1.bf16.msra.mxu0 0
        %809 = vmatprep.subr.bf16.mxu0 0
        %810 = vmatpush1.bf16.msra.mxu0 0
        %811 = vmatprep.subr.bf16.mxu0 0
        %812 = vmatpush1.bf16.msra.mxu0 0
        %813 = vmatprep.subr.bf16.mxu0 0
        %814 = vmatpush1.bf16.msra.mxu0 0
        %815 = vmatprep.subr.bf16.mxu0 0
        %816 = vmatpush1.bf16.msra.mxu0 0
        %817 = vmatprep.subr.bf16.mxu0 0
        %818 = vmatpush1.bf16.msra.mxu0 0
        %819 = vmatprep.mubr.bf16.mxu0 0
        %820 = vmatmul.mubr.bf16.gmra.mrb[0].mxu0 %v758
        %v821 = vpop.f32.mrb[0].mxu0
        %v822 = vadd.f32 0.0, %v821
        %v823 = vpop.f32.mrb[0].mxu0
        %v824 = vadd.f32 0.0, %v823
        %v825 = vpop.f32.mrb[0].mxu0
        %v826 = vpop.f32.mrb[0].mxu0
        %827 = vdwg.mxu0
        %828 = vmatprep.subr.bf16.mxu0 %v770
        %829 = vmatpush1.bf16.msra.mxu0 %v767
        %830 = vmatprep.subr.bf16.mxu0 0
        %831 = vmatpush1.bf16.msra.mxu0 0
        %832 = vmatprep.subr.bf16.mxu0 0
        %833 = vmatpush1.bf16.msra.mxu0 0
        %834 = vmatprep.subr.bf16.mxu0 0
        %835 = vmatpush1.bf16.msra.mxu0 0
        %836 = vmatprep.subr.bf16.mxu0 0
        %837 = vmatpush1.bf16.msra.mxu0 0
        %838 = vmatprep.subr.bf16.mxu0 0
        %839 = vmatpush1.bf16.msra.mxu0 0
        %840 = vmatprep.subr.bf16.mxu0 0
        %841 = vmatpush1.bf16.msra.mxu0 0
        %842 = vmatprep.subr.bf16.mxu0 0
        %843 = vmatpush1.bf16.msra.mxu0 0
        %844 = vmatprep.subr.bf16.mxu0 0
        %845 = vmatpush1.bf16.msra.mxu0 0
        %846 = vmatprep.subr.bf16.mxu0 0
        %847 = vmatpush1.bf16.msra.mxu0 0
        %848 = vmatprep.subr.bf16.mxu0 0
        %849 = vmatpush1.bf16.msra.mxu0 0
        %850 = vmatprep.subr.bf16.mxu0 0
        %851 = vmatpush1.bf16.msra.mxu0 0
        %852 = vmatprep.subr.bf16.mxu0 0
        %853 = vmatpush1.bf16.msra.mxu0 0
        %854 = vmatprep.subr.bf16.mxu0 0
        %855 = vmatpush1.bf16.msra.mxu0 0
        %856 = vmatprep.subr.bf16.mxu0 0
        %857 = vmatpush1.bf16.msra.mxu0 0
        %858 = vmatprep.subr.bf16.mxu0 0
        %859 = vmatpush1.bf16.msra.mxu0 0
        %860 = vmatprep.mubr.bf16.mxu0 0
        %861 = vmatmul.mubr.bf16.gmra.mrb[0].mxu0 %v758
        %v862 = vpop.f32.mrb[0].mxu0
        %v863 = vadd.f32 0.0, %v862
        %v864 = vpop.f32.mrb[0].mxu0
        %v865 = vadd.f32 0.0, %v864
        %v866 = vpop.f32.mrb[0].mxu0
        %v867 = vpop.f32.mrb[0].mxu0
        %868 = vdwg.mxu0
        %869 = vmatprep.subr.bf16.mxu0 %v776
        %870 = vmatpush1.bf16.msra.mxu0 %v773
        %871 = vmatprep.subr.bf16.mxu0 0
        %872 = vmatpush1.bf16.msra.mxu0 0
        %873 = vmatprep.subr.bf16.mxu0 0
        %874 = vmatpush1.bf16.msra.mxu0 0
        %875 = vmatprep.subr.bf16.mxu0 0
        %876 = vmatpush1.bf16.msra.mxu0 0
        %877 = vmatprep.subr.bf16.mxu0 0
        %878 = vmatpush1.bf16.msra.mxu0 0
        %879 = vmatprep.subr.bf16.mxu0 0
        %880 = vmatpush1.bf16.msra.mxu0 0
        %881 = vmatprep.subr.bf16.mxu0 0
        %882 = vmatpush1.bf16.msra.mxu0 0
        %883 = vmatprep.subr.bf16.mxu0 0
        %884 = vmatpush1.bf16.msra.mxu0 0
        %885 = vmatprep.subr.bf16.mxu0 0
        %886 = vmatpush1.bf16.msra.mxu0 0
        %887 = vmatprep.subr.bf16.mxu0 0
        %888 = vmatpush1.bf16.msra.mxu0 0
        %889 = vmatprep.subr.bf16.mxu0 0
        %890 = vmatpush1.bf16.msra.mxu0 0
        %891 = vmatprep.subr.bf16.mxu0 0
        %892 = vmatpush1.bf16.msra.mxu0 0
        %893 = vmatprep.subr.bf16.mxu0 0
        %894 = vmatpush1.bf16.msra.mxu0 0
        %895 = vmatprep.subr.bf16.mxu0 0
        %896 = vmatpush1.bf16.msra.mxu0 0
        %897 = vmatprep.subr.bf16.mxu0 0
        %898 = vmatpush1.bf16.msra.mxu0 0
        %899 = vmatprep.subr.bf16.mxu0 0
        %900 = vmatpush1.bf16.msra.mxu0 0
        %901 = vmatprep.mubr.bf16.mxu0 0
        %902 = vmatmul.mubr.bf16.gmra.mrb[0].mxu0 %v758
        %v903 = vpop.f32.mrb[0].mxu0
        %v904 = vadd.f32 0.0, %v903
        %v905 = vpop.f32.mrb[0].mxu0
        %v906 = vadd.f32 0.0, %v905
        %v907 = vpop.f32.mrb[0].mxu0
        %v908 = vpop.f32.mrb[0].mxu0
        %909 = vdwg.mxu0
        %910 = vmatprep.subr.bf16.mxu0 %v782
        %911 = vmatpush1.bf16.msra.mxu0 %v779
        %912 = vmatprep.subr.bf16.mxu0 0
        %913 = vmatpush1.bf16.msra.mxu0 0
        %914 = vmatprep.subr.bf16.mxu0 0
        %915 = vmatpush1.bf16.msra.mxu0 0
        %916 = vmatprep.subr.bf16.mxu0 0
        %917 = vmatpush1.bf16.msra.mxu0 0
        %918 = vmatprep.subr.bf16.mxu0 0
        %919 = vmatpush1.bf16.msra.mxu0 0
        %920 = vmatprep.subr.bf16.mxu0 0
        %921 = vmatpush1.bf16.msra.mxu0 0
        %922 = vmatprep.subr.bf16.mxu0 0
        %923 = vmatpush1.bf16.msra.mxu0 0
        %924 = vmatprep.subr.bf16.mxu0 0
        %925 = vmatpush1.bf16.msra.mxu0 0
        %926 = vmatprep.subr.bf16.mxu0 0
        %927 = vmatpush1.bf16.msra.mxu0 0
        %928 = vmatprep.subr.bf16.mxu0 0
        %929 = vmatpush1.bf16.msra.mxu0 0
        %930 = vmatprep.subr.bf16.mxu0 0
        %931 = vmatpush1.bf16.msra.mxu0 0
        %932 = vmatprep.subr.bf16.mxu0 0
        %933 = vmatpush1.bf16.msra.mxu0 0
        %934 = vmatprep.subr.bf16.mxu0 0
        %935 = vmatpush1.bf16.msra.mxu0 0
        %936 = vmatprep.subr.bf16.mxu0 0
        %937 = vmatpush1.bf16.msra.mxu0 0
        %938 = vmatprep.subr.bf16.mxu0 0
        %939 = vmatpush1.bf16.msra.mxu0 0
        %940 = vmatprep.subr.bf16.mxu0 0
        %941 = vmatpush1.bf16.msra.mxu0 0
        %942 = vmatprep.mubr.bf16.mxu0 0
        %943 = vmatmul.mubr.bf16.gmra.mrb[0].mxu0 %v758
        %v944 = vpop.f32.mrb[0].mxu0
        %v945 = vadd.f32 0.0, %v944
        %v946 = vpop.f32.mrb[0].mxu0
        %v947 = vadd.f32 0.0, %v946
        %v948 = vpop.f32.mrb[0].mxu0
        %v949 = vpop.f32.mrb[0].mxu0
        %950 = vdwg.mxu0
        %951 = vmatprep.subr.bf16.mxu0 0
        %952 = vmatpush1.bf16.msra.mxu0 %v785
        %953 = vmatprep.subr.bf16.mxu0 0
        %954 = vmatpush1.bf16.msra.mxu0 0
        %955 = vmatprep.subr.bf16.mxu0 0
        %956 = vmatpush1.bf16.msra.mxu0 0
        %957 = vmatprep.subr.bf16.mxu0 0
        %958 = vmatpush1.bf16.msra.mxu0 0
        %959 = vmatprep.subr.bf16.mxu0 0
        %960 = vmatpush1.bf16.msra.mxu0 0
        %961 = vmatprep.subr.bf16.mxu0 0
        %962 = vmatpush1.bf16.msra.mxu0 0
        %963 = vmatprep.subr.bf16.mxu0 0
        %964 = vmatpush1.bf16.msra.mxu0 0
        %965 = vmatprep.subr.bf16.mxu0 0
        %966 = vmatpush1.bf16.msra.mxu0 0
        %967 = vmatprep.subr.bf16.mxu0 0
        %968 = vmatpush1.bf16.msra.mxu0 0
        %969 = vmatprep.subr.bf16.mxu0 0
        %970 = vmatpush1.bf16.msra.mxu0 0
        %971 = vmatprep.subr.bf16.mxu0 0
        %972 = vmatpush1.bf16.msra.mxu0 0
        %973 = vmatprep.subr.bf16.mxu0 0
        %974 = vmatpush1.bf16.msra.mxu0 0
        %975 = vmatprep.subr.bf16.mxu0 0
        %976 = vmatpush1.bf16.msra.mxu0 0
        %977 = vmatprep.subr.bf16.mxu0 0
        %978 = vmatpush1.bf16.msra.mxu0 0
        %979 = vmatprep.subr.bf16.mxu0 0
        %980 = vmatpush1.bf16.msra.mxu0 0
        %981 = vmatprep.subr.bf16.mxu0 0
        %982 = vmatpush1.bf16.msra.mxu0 0
        %983 = vmatprep.mubr.bf16.mxu0 0
        %984 = vmatmul.mubr.bf16.gmra.mrb[0].mxu0 %v758
        %v985 = vpop.f32.mrb[0].mxu0
        %v986 = vadd.f32 0.0, %v985
        %v987 = vpop.f32.mrb[0].mxu0
        %v988 = vpop.f32.mrb[0].mxu0
        %v989 = vpop.f32.mrb[0].mxu0
        %990 = vdwg.mxu0
        %v991 = vadd.f32 %v558, %v822
        %v992 = vadd.f32 %v560, %v824
        %v993 = vadd.f32 %v599, %v863
        %v994 = vadd.f32 %v601, %v865
        %v995 = vadd.f32 %v640, %v904
        %v996 = vadd.f32 %v642, %v906
        %v997 = vadd.f32 %v681, %v945
        %v998 = vadd.f32 %v683, %v947
        %v999 = vadd.f32 %v722, %v986
        %1000 = vrot.lane.b32.xlu0 %v192, 94
        %v1001 = vpop.permute.xlu0 %1000
        %1002 = vrot.lane.b32.xlu0 %v200, 94
        %v1003 = vpop.permute.xlu0 %1002
        %1004 = vrot.lane.b32.xlu0 %v199, 94
        %v1005 = vpop.permute.xlu0 %1004
        %1006 = vrot.lane.b32.xlu0 %v201, 94
        %v1007 = vpop.permute.xlu0 %1006
        %1008 = vrot.lane.b32.xlu0 %v209, 94
        %v1009 = vpop.permute.xlu0 %1008
        %1010 = vrot.lane.b32.xlu0 %v217, 94
        %v1011 = vpop.permute.xlu0 %1010
        %1012 = vrot.lane.b32.xlu0 %v216, 94
        %v1013 = vpop.permute.xlu0 %1012
        %1014 = vrot.lane.b32.xlu0 %v218, 94
        %v1015 = vpop.permute.xlu0 %1014
        %1016 = vrot.lane.b32.xlu0 %v225, 94
        %v1017 = vpop.permute.xlu0 %1016
        %1018 = vrot.lane.b32.xlu0 %v226, 94
        %v1019 = vpop.permute.xlu0 %1018
        %vm1020 = vcmask 769024
        %v1021 = vsel %vm1020, %v1001, %v1003
        %v1022 = vsel %vm1020, %v1003, %v1005
        %v1023 = vsel %vm1020, %v1005, %v1007
        %v1024 = vsel %vm1020, %v1007, %v1009
        %v1025 = vsel %vm1020, %v1009, %v1011
        %v1026 = vsel %vm1020, %v1011, %v1013
        %v1027 = vsel %vm1020, %v1013, %v1015
        %v1028 = vsel %vm1020, %v1015, %v1017
        %v1029 = vsel %vm1020, %v1017, %v1019
        %v1031 = vsel %vm257, %v176, 0
        %v1034 = vsel %vm261, %v1021, 0
        %v1037 = vsel %vm261, %v1022, 0
        %v1040 = vsel %vm261, %v1023, 0
        %v1043 = vsel %vm261, %v1024, 0
        %v1046 = vsel %vm261, %v1025, 0
        %v1049 = vsel %vm261, %v1026, 0
        %v1052 = vsel %vm261, %v1027, 0
        %v1055 = vsel %vm261, %v1028, 0
        %v1058 = vsel %vm261, %v1029, 0
        %1060 = vmatprep.subr.bf16.mxu0 %v1037
        %1061 = vmatpush1.bf16.msra.mxu0 %v1034
        %1062 = vmatprep.subr.bf16.mxu0 0
        %1063 = vmatpush1.bf16.msra.mxu0 0
        %1064 = vmatprep.subr.bf16.mxu0 0
        %1065 = vmatpush1.bf16.msra.mxu0 0
        %1066 = vmatprep.subr.bf16.mxu0 0
        %1067 = vmatpush1.bf16.msra.mxu0 0
        %1068 = vmatprep.subr.bf16.mxu0 0
        %1069 = vmatpush1.bf16.msra.mxu0 0
        %1070 = vmatprep.subr.bf16.mxu0 0
        %1071 = vmatpush1.bf16.msra.mxu0 0
        %1072 = vmatprep.subr.bf16.mxu0 0
        %1073 = vmatpush1.bf16.msra.mxu0 0
        %1074 = vmatprep.subr.bf16.mxu0 0
        %1075 = vmatpush1.bf16.msra.mxu0 0
        %1076 = vmatprep.subr.bf16.mxu0 0
        %1077 = vmatpush1.bf16.msra.mxu0 0
        %1078 = vmatprep.subr.bf16.mxu0 0
        %1079 = vmatpush1.bf16.msra.mxu0 0
        %1080 = vmatprep.subr.bf16.mxu0 0
        %1081 = vmatpush1.bf16.msra.mxu0 0
        %1082 = vmatprep.subr.bf16.mxu0 0
        %1083 = vmatpush1.bf16.msra.mxu0 0
        %1084 = vmatprep.subr.bf16.mxu0 0
        %1085 = vmatpush1.bf16.msra.mxu0 0
        %1086 = vmatprep.subr.bf16.mxu0 0
        %1087 = vmatpush1.bf16.msra.mxu0 0
        %1088 = vmatprep.subr.bf16.mxu0 0
        %1089 = vmatpush1.bf16.msra.mxu0 0
        %1090 = vmatprep.subr.bf16.mxu0 0
        %1091 = vmatpush1.bf16.msra.mxu0 0
        %1092 = vmatprep.mubr.bf16.mxu0 0
        %1093 = vmatmul.mubr.bf16.gmra.mrb[0].mxu0 %v1031
        %v1094 = vpop.f32.mrb[0].mxu0
        %v1095 = vadd.f32 0.0, %v1094
        %v1096 = vpop.f32.mrb[0].mxu0
        %v1097 = vadd.f32 0.0, %v1096
        %v1098 = vpop.f32.mrb[0].mxu0
        %v1099 = vpop.f32.mrb[0].mxu0
        %1100 = vdwg.mxu0
        %1101 = vmatprep.subr.bf16.mxu0 %v1043
        %1102 = vmatpush1.bf16.msra.mxu0 %v1040
        %1103 = vmatprep.subr.bf16.mxu0 0
        %1104 = vmatpush1.bf16.msra.mxu0 0
        %1105 = vmatprep.subr.bf16.mxu0 0
        %1106 = vmatpush1.bf16.msra.mxu0 0
        %1107 = vmatprep.subr.bf16.mxu0 0
        %1108 = vmatpush1.bf16.msra.mxu0 0
        %1109 = vmatprep.subr.bf16.mxu0 0
        %1110 = vmatpush1.bf16.msra.mxu0 0
        %1111 = vmatprep.subr.bf16.mxu0 0
        %1112 = vmatpush1.bf16.msra.mxu0 0
        %1113 = vmatprep.subr.bf16.mxu0 0
        %1114 = vmatpush1.bf16.msra.mxu0 0
        %1115 = vmatprep.subr.bf16.mxu0 0
        %1116 = vmatpush1.bf16.msra.mxu0 0
        %1117 = vmatprep.subr.bf16.mxu0 0
        %1118 = vmatpush1.bf16.msra.mxu0 0
        %1119 = vmatprep.subr.bf16.mxu0 0
        %1120 = vmatpush1.bf16.msra.mxu0 0
        %1121 = vmatprep.subr.bf16.mxu0 0
        %1122 = vmatpush1.bf16.msra.mxu0 0
        %1123 = vmatprep.subr.bf16.mxu0 0
        %1124 = vmatpush1.bf16.msra.mxu0 0
        %1125 = vmatprep.subr.bf16.mxu0 0
        %1126 = vmatpush1.bf16.msra.mxu0 0
        %1127 = vmatprep.subr.bf16.mxu0 0
        %1128 = vmatpush1.bf16.msra.mxu0 0
        %1129 = vmatprep.subr.bf16.mxu0 0
        %1130 = vmatpush1.bf16.msra.mxu0 0
        %1131 = vmatprep.subr.bf16.mxu0 0
        %1132 = vmatpush1.bf16.msra.mxu0 0
        %1133 = vmatprep.mubr.bf16.mxu0 0
        %1134 = vmatmul.mubr.bf16.gmra.mrb[0].mxu0 %v1031
        %v1135 = vpop.f32.mrb[0].mxu0
        %v1136 = vadd.f32 0.0, %v1135
        %v1137 = vpop.f32.mrb[0].mxu0
        %v1138 = vadd.f32 0.0, %v1137
        %v1139 = vpop.f32.mrb[0].mxu0
        %v1140 = vpop.f32.mrb[0].mxu0
        %1141 = vdwg.mxu0
        %1142 = vmatprep.subr.bf16.mxu0 %v1049
        %1143 = vmatpush1.bf16.msra.mxu0 %v1046
        %1144 = vmatprep.subr.bf16.mxu0 0
        %1145 = vmatpush1.bf16.msra.mxu0 0
        %1146 = vmatprep.subr.bf16.mxu0 0
        %1147 = vmatpush1.bf16.msra.mxu0 0
        %1148 = vmatprep.subr.bf16.mxu0 0
        %1149 = vmatpush1.bf16.msra.mxu0 0
        %1150 = vmatprep.subr.bf16.mxu0 0
        %1151 = vmatpush1.bf16.msra.mxu0 0
        %1152 = vmatprep.subr.bf16.mxu0 0
        %1153 = vmatpush1.bf16.msra.mxu0 0
        %1154 = vmatprep.subr.bf16.mxu0 0
        %1155 = vmatpush1.bf16.msra.mxu0 0
        %1156 = vmatprep.subr.bf16.mxu0 0
        %1157 = vmatpush1.bf16.msra.mxu0 0
        %1158 = vmatprep.subr.bf16.mxu0 0
        %1159 = vmatpush1.bf16.msra.mxu0 0
        %1160 = vmatprep.subr.bf16.mxu0 0
        %1161 = vmatpush1.bf16.msra.mxu0 0
        %1162 = vmatprep.subr.bf16.mxu0 0
        %1163 = vmatpush1.bf16.msra.mxu0 0
        %1164 = vmatprep.subr.bf16.mxu0 0
        %1165 = vmatpush1.bf16.msra.mxu0 0
        %1166 = vmatprep.subr.bf16.mxu0 0
        %1167 = vmatpush1.bf16.msra.mxu0 0
        %1168 = vmatprep.subr.bf16.mxu0 0
        %1169 = vmatpush1.bf16.msra.mxu0 0
        %1170 = vmatprep.subr.bf16.mxu0 0
        %1171 = vmatpush1.bf16.msra.mxu0 0
        %1172 = vmatprep.subr.bf16.mxu0 0
        %1173 = vmatpush1.bf16.msra.mxu0 0
        %1174 = vmatprep.mubr.bf16.mxu0 0
        %1175 = vmatmul.mubr.bf16.gmra.mrb[0].mxu0 %v1031
        %v1176 = vpop.f32.mrb[0].mxu0
        %v1177 = vadd.f32 0.0, %v1176
        %v1178 = vpop.f32.mrb[0].mxu0
        %v1179 = vadd.f32 0.0, %v1178
        %v1180 = vpop.f32.mrb[0].mxu0
        %v1181 = vpop.f32.mrb[0].mxu0
        %1182 = vdwg.mxu0
        %1183 = vmatprep.subr.bf16.mxu0 %v1055
        %1184 = vmatpush1.bf16.msra.mxu0 %v1052
        %1185 = vmatprep.subr.bf16.mxu0 0
        %1186 = vmatpush1.bf16.msra.mxu0 0
        %1187 = vmatprep.subr.bf16.mxu0 0
        %1188 = vmatpush1.bf16.msra.mxu0 0
        %1189 = vmatprep.subr.bf16.mxu0 0
        %1190 = vmatpush1.bf16.msra.mxu0 0
        %1191 = vmatprep.subr.bf16.mxu0 0
        %1192 = vmatpush1.bf16.msra.mxu0 0
        %1193 = vmatprep.subr.bf16.mxu0 0
        %1194 = vmatpush1.bf16.msra.mxu0 0
        %1195 = vmatprep.subr.bf16.mxu0 0
        %1196 = vmatpush1.bf16.msra.mxu0 0
        %1197 = vmatprep.subr.bf16.mxu0 0
        %1198 = vmatpush1.bf16.msra.mxu0 0
        %1199 = vmatprep.subr.bf16.mxu0 0
        %1200 = vmatpush1.bf16.msra.mxu0 0
        %1201 = vmatprep.subr.bf16.mxu0 0
        %1202 = vmatpush1.bf16.msra.mxu0 0
        %1203 = vmatprep.subr.bf16.mxu0 0
        %1204 = vmatpush1.bf16.msra.mxu0 0
        %1205 = vmatprep.subr.bf16.mxu0 0
        %1206 = vmatpush1.bf16.msra.mxu0 0
        %1207 = vmatprep.subr.bf16.mxu0 0
        %1208 = vmatpush1.bf16.msra.mxu0 0
        %1209 = vmatprep.subr.bf16.mxu0 0
        %1210 = vmatpush1.bf16.msra.mxu0 0
        %1211 = vmatprep.subr.bf16.mxu0 0
        %1212 = vmatpush1.bf16.msra.mxu0 0
        %1213 = vmatprep.subr.bf16.mxu0 0
        %1214 = vmatpush1.bf16.msra.mxu0 0
        %1215 = vmatprep.mubr.bf16.mxu0 0
        %1216 = vmatmul.mubr.bf16.gmra.mrb[0].mxu0 %v1031
        %v1217 = vpop.f32.mrb[0].mxu0
        %v1218 = vadd.f32 0.0, %v1217
        %v1219 = vpop.f32.mrb[0].mxu0
        %v1220 = vadd.f32 0.0, %v1219
        %v1221 = vpop.f32.mrb[0].mxu0
        %v1222 = vpop.f32.mrb[0].mxu0
        %1223 = vdwg.mxu0
        %1224 = vmatprep.subr.bf16.mxu0 0
        %1225 = vmatpush1.bf16.msra.mxu0 %v1058
        %1226 = vmatprep.subr.bf16.mxu0 0
        %1227 = vmatpush1.bf16.msra.mxu0 0
        %1228 = vmatprep.subr.bf16.mxu0 0
        %1229 = vmatpush1.bf16.msra.mxu0 0
        %1230 = vmatprep.subr.bf16.mxu0 0
        %1231 = vmatpush1.bf16.msra.mxu0 0
        %1232 = vmatprep.subr.bf16.mxu0 0
        %1233 = vmatpush1.bf16.msra.mxu0 0
        %1234 = vmatprep.subr.bf16.mxu0 0
        %1235 = vmatpush1.bf16.msra.mxu0 0
        %1236 = vmatprep.subr.bf16.mxu0 0
        %1237 = vmatpush1.bf16.msra.mxu0 0
        %1238 = vmatprep.subr.bf16.mxu0 0
        %1239 = vmatpush1.bf16.msra.mxu0 0
        %1240 = vmatprep.subr.bf16.mxu0 0
        %1241 = vmatpush1.bf16.msra.mxu0 0
        %1242 = vmatprep.subr.bf16.mxu0 0
        %1243 = vmatpush1.bf16.msra.mxu0 0
        %1244 = vmatprep.subr.bf16.mxu0 0
        %1245 = vmatpush1.bf16.msra.mxu0 0
        %1246 = vmatprep.subr.bf16.mxu0 0
        %1247 = vmatpush1.bf16.msra.mxu0 0
        %1248 = vmatprep.subr.bf16.mxu0 0
        %1249 = vmatpush1.bf16.msra.mxu0 0
        %1250 = vmatprep.subr.bf16.mxu0 0
        %1251 = vmatpush1.bf16.msra.mxu0 0
        %1252 = vmatprep.subr.bf16.mxu0 0
        %1253 = vmatpush1.bf16.msra.mxu0 0
        %1254 = vmatprep.subr.bf16.mxu0 0
        %1255 = vmatpush1.bf16.msra.mxu0 0
        %1256 = vmatprep.mubr.bf16.mxu0 0
        %1257 = vmatmul.mubr.bf16.gmra.mrb[0].mxu0 %v1031
        %v1258 = vpop.f32.mrb[0].mxu0
        %v1259 = vadd.f32 0.0, %v1258
        %v1260 = vpop.f32.mrb[0].mxu0
        %v1261 = vpop.f32.mrb[0].mxu0
        %v1262 = vpop.f32.mrb[0].mxu0
        %1263 = vdwg.mxu0
        %v1264 = vadd.f32 %v991, %v1095
        %v1265 = vadd.f32 %v992, %v1097
        %v1266 = vadd.f32 %v993, %v1136
        %v1267 = vadd.f32 %v994, %v1138
        %v1268 = vadd.f32 %v995, %v1177
        %v1269 = vadd.f32 %v996, %v1179
        %v1270 = vadd.f32 %v997, %v1218
        %v1271 = vadd.f32 %v998, %v1220
        %v1272 = vadd.f32 %v999, %v1259
        %1273 = vrot.lane.b32.xlu0 %v192, 93
        %v1274 = vpop.permute.xlu0 %1273
        %1275 = vrot.lane.b32.xlu0 %v200, 93
        %v1276 = vpop.permute.xlu0 %1275
        %1277 = vrot.lane.b32.xlu0 %v199, 93
        %v1278 = vpop.permute.xlu0 %1277
        %1279 = vrot.lane.b32.xlu0 %v201, 93
        %v1280 = vpop.permute.xlu0 %1279
        %1281 = vrot.lane.b32.xlu0 %v209, 93
        %v1282 = vpop.permute.xlu0 %1281
        %1283 = vrot.lane.b32.xlu0 %v217, 93
        %v1284 = vpop.permute.xlu0 %1283
        %1285 = vrot.lane.b32.xlu0 %v216, 93
        %v1286 = vpop.permute.xlu0 %1285
        %1287 = vrot.lane.b32.xlu0 %v218, 93
        %v1288 = vpop.permute.xlu0 %1287
        %1289 = vrot.lane.b32.xlu0 %v225, 93
        %v1290 = vpop.permute.xlu0 %1289
        %1291 = vrot.lane.b32.xlu0 %v226, 93
        %v1292 = vpop.permute.xlu0 %1291
        %vm1293 = vcmask 760832
        %v1294 = vsel %vm1293, %v1274, %v1276
        %v1295 = vsel %vm1293, %v1276, %v1278
        %v1296 = vsel %vm1293, %v1278, %v1280
        %v1297 = vsel %vm1293, %v1280, %v1282
        %v1298 = vsel %vm1293, %v1282, %v1284
        %v1299 = vsel %vm1293, %v1284, %v1286
        %v1300 = vsel %vm1293, %v1286, %v1288
        %v1301 = vsel %vm1293, %v1288, %v1290
        %v1302 = vsel %vm1293, %v1290, %v1292
        %v1304 = vsel %vm257, %v177, 0
        %v1307 = vsel %vm261, %v1294, 0
        %v1310 = vsel %vm261, %v1295, 0
        %v1313 = vsel %vm261, %v1296, 0
        %v1316 = vsel %vm261, %v1297, 0
        %v1319 = vsel %vm261, %v1298, 0
        %v1322 = vsel %vm261, %v1299, 0
        %v1325 = vsel %vm261, %v1300, 0
        %v1328 = vsel %vm261, %v1301, 0
        %v1331 = vsel %vm261, %v1302, 0
        %1333 = vmatprep.subr.bf16.mxu0 %v1310
        %1334 = vmatpush1.bf16.msra.mxu0 %v1307
        %1335 = vmatprep.subr.bf16.mxu0 0
        %1336 = vmatpush1.bf16.msra.mxu0 0
        %1337 = vmatprep.subr.bf16.mxu0 0
        %1338 = vmatpush1.bf16.msra.mxu0 0
        %1339 = vmatprep.subr.bf16.mxu0 0
        %1340 = vmatpush1.bf16.msra.mxu0 0
        %1341 = vmatprep.subr.bf16.mxu0 0
        %1342 = vmatpush1.bf16.msra.mxu0 0
        %1343 = vmatprep.subr.bf16.mxu0 0
        %1344 = vmatpush1.bf16.msra.mxu0 0
        %1345 = vmatprep.subr.bf16.mxu0 0
        %1346 = vmatpush1.bf16.msra.mxu0 0
        %1347 = vmatprep.subr.bf16.mxu0 0
        %1348 = vmatpush1.bf16.msra.mxu0 0
        %1349 = vmatprep.subr.bf16.mxu0 0
        %1350 = vmatpush1.bf16.msra.mxu0 0
        %1351 = vmatprep.subr.bf16.mxu0 0
        %1352 = vmatpush1.bf16.msra.mxu0 0
        %1353 = vmatprep.subr.bf16.mxu0 0
        %1354 = vmatpush1.bf16.msra.mxu0 0
        %1355 = vmatprep.subr.bf16.mxu0 0
        %1356 = vmatpush1.bf16.msra.mxu0 0
        %1357 = vmatprep.subr.bf16.mxu0 0
        %1358 = vmatpush1.bf16.msra.mxu0 0
        %1359 = vmatprep.subr.bf16.mxu0 0
        %1360 = vmatpush1.bf16.msra.mxu0 0
        %1361 = vmatprep.subr.bf16.mxu0 0
        %1362 = vmatpush1.bf16.msra.mxu0 0
        %1363 = vmatprep.subr.bf16.mxu0 0
        %1364 = vmatpush1.bf16.msra.mxu0 0
        %1365 = vmatprep.mubr.bf16.mxu0 0
        %1366 = vmatmul.mubr.bf16.gmra.mrb[0].mxu0 %v1304
        %v1367 = vpop.f32.mrb[0].mxu0
        %v1368 = vadd.f32 0.0, %v1367
        %v1369 = vpop.f32.mrb[0].mxu0
        %v1370 = vadd.f32 0.0, %v1369
        %v1371 = vpop.f32.mrb[0].mxu0
        %v1372 = vpop.f32.mrb[0].mxu0
        %1373 = vdwg.mxu0
        %1374 = vmatprep.subr.bf16.mxu0 %v1316
        %1375 = vmatpush1.bf16.msra.mxu0 %v1313
        %1376 = vmatprep.subr.bf16.mxu0 0
        %1377 = vmatpush1.bf16.msra.mxu0 0
        %1378 = vmatprep.subr.bf16.mxu0 0
        %1379 = vmatpush1.bf16.msra.mxu0 0
        %1380 = vmatprep.subr.bf16.mxu0 0
        %1381 = vmatpush1.bf16.msra.mxu0 0
        %1382 = vmatprep.subr.bf16.mxu0 0
        %1383 = vmatpush1.bf16.msra.mxu0 0
        %1384 = vmatprep.subr.bf16.mxu0 0
        %1385 = vmatpush1.bf16.msra.mxu0 0
        %1386 = vmatprep.subr.bf16.mxu0 0
        %1387 = vmatpush1.bf16.msra.mxu0 0
        %1388 = vmatprep.subr.bf16.mxu0 0
        %1389 = vmatpush1.bf16.msra.mxu0 0
        %1390 = vmatprep.subr.bf16.mxu0 0
        %1391 = vmatpush1.bf16.msra.mxu0 0
        %1392 = vmatprep.subr.bf16.mxu0 0
        %1393 = vmatpush1.bf16.msra.mxu0 0
        %1394 = vmatprep.subr.bf16.mxu0 0
        %1395 = vmatpush1.bf16.msra.mxu0 0
        %1396 = vmatprep.subr.bf16.mxu0 0
        %1397 = vmatpush1.bf16.msra.mxu0 0
        %1398 = vmatprep.subr.bf16.mxu0 0
        %1399 = vmatpush1.bf16.msra.mxu0 0
        %1400 = vmatprep.subr.bf16.mxu0 0
        %1401 = vmatpush1.bf16.msra.mxu0 0
        %1402 = vmatprep.subr.bf16.mxu0 0
        %1403 = vmatpush1.bf16.msra.mxu0 0
        %1404 = vmatprep.subr.bf16.mxu0 0
        %1405 = vmatpush1.bf16.msra.mxu0 0
        %1406 = vmatprep.mubr.bf16.mxu0 0
        %1407 = vmatmul.mubr.bf16.gmra.mrb[0].mxu0 %v1304
        %v1408 = vpop.f32.mrb[0].mxu0
        %v1409 = vadd.f32 0.0, %v1408
        %v1410 = vpop.f32.mrb[0].mxu0
        %v1411 = vadd.f32 0.0, %v1410
        %v1412 = vpop.f32.mrb[0].mxu0
        %v1413 = vpop.f32.mrb[0].mxu0
        %1414 = vdwg.mxu0
        %1415 = vmatprep.subr.bf16.mxu0 %v1322
        %1416 = vmatpush1.bf16.msra.mxu0 %v1319
        %1417 = vmatprep.subr.bf16.mxu0 0
        %1418 = vmatpush1.bf16.msra.mxu0 0
        %1419 = vmatprep.subr.bf16.mxu0 0
        %1420 = vmatpush1.bf16.msra.mxu0 0
        %1421 = vmatprep.subr.bf16.mxu0 0
        %1422 = vmatpush1.bf16.msra.mxu0 0
        %1423 = vmatprep.subr.bf16.mxu0 0
        %1424 = vmatpush1.bf16.msra.mxu0 0
        %1425 = vmatprep.subr.bf16.mxu0 0
        %1426 = vmatpush1.bf16.msra.mxu0 0
        %1427 = vmatprep.subr.bf16.mxu0 0
        %1428 = vmatpush1.bf16.msra.mxu0 0
        %1429 = vmatprep.subr.bf16.mxu0 0
        %1430 = vmatpush1.bf16.msra.mxu0 0
        %1431 = vmatprep.subr.bf16.mxu0 0
        %1432 = vmatpush1.bf16.msra.mxu0 0
        %1433 = vmatprep.subr.bf16.mxu0 0
        %1434 = vmatpush1.bf16.msra.mxu0 0
        %1435 = vmatprep.subr.bf16.mxu0 0
        %1436 = vmatpush1.bf16.msra.mxu0 0
        %1437 = vmatprep.subr.bf16.mxu0 0
        %1438 = vmatpush1.bf16.msra.mxu0 0
        %1439 = vmatprep.subr.bf16.mxu0 0
        %1440 = vmatpush1.bf16.msra.mxu0 0
        %1441 = vmatprep.subr.bf16.mxu0 0
        %1442 = vmatpush1.bf16.msra.mxu0 0
        %1443 = vmatprep.subr.bf16.mxu0 0
        %1444 = vmatpush1.bf16.msra.mxu0 0
        %1445 = vmatprep.subr.bf16.mxu0 0
        %1446 = vmatpush1.bf16.msra.mxu0 0
        %1447 = vmatprep.mubr.bf16.mxu0 0
        %1448 = vmatmul.mubr.bf16.gmra.mrb[0].mxu0 %v1304
        %v1449 = vpop.f32.mrb[0].mxu0
        %v1450 = vadd.f32 0.0, %v1449
        %v1451 = vpop.f32.mrb[0].mxu0
        %v1452 = vadd.f32 0.0, %v1451
        %v1453 = vpop.f32.mrb[0].mxu0
        %v1454 = vpop.f32.mrb[0].mxu0
        %1455 = vdwg.mxu0
        %1456 = vmatprep.subr.bf16.mxu0 %v1328
        %1457 = vmatpush1.bf16.msra.mxu0 %v1325
        %1458 = vmatprep.subr.bf16.mxu0 0
        %1459 = vmatpush1.bf16.msra.mxu0 0
        %1460 = vmatprep.subr.bf16.mxu0 0
        %1461 = vmatpush1.bf16.msra.mxu0 0
        %1462 = vmatprep.subr.bf16.mxu0 0
        %1463 = vmatpush1.bf16.msra.mxu0 0
        %1464 = vmatprep.subr.bf16.mxu0 0
        %1465 = vmatpush1.bf16.msra.mxu0 0
        %1466 = vmatprep.subr.bf16.mxu0 0
        %1467 = vmatpush1.bf16.msra.mxu0 0
        %1468 = vmatprep.subr.bf16.mxu0 0
        %1469 = vmatpush1.bf16.msra.mxu0 0
        %1470 = vmatprep.subr.bf16.mxu0 0
        %1471 = vmatpush1.bf16.msra.mxu0 0
        %1472 = vmatprep.subr.bf16.mxu0 0
        %1473 = vmatpush1.bf16.msra.mxu0 0
        %1474 = vmatprep.subr.bf16.mxu0 0
        %1475 = vmatpush1.bf16.msra.mxu0 0
        %1476 = vmatprep.subr.bf16.mxu0 0
        %1477 = vmatpush1.bf16.msra.mxu0 0
        %1478 = vmatprep.subr.bf16.mxu0 0
        %1479 = vmatpush1.bf16.msra.mxu0 0
        %1480 = vmatprep.subr.bf16.mxu0 0
        %1481 = vmatpush1.bf16.msra.mxu0 0
        %1482 = vmatprep.subr.bf16.mxu0 0
        %1483 = vmatpush1.bf16.msra.mxu0 0
        %1484 = vmatprep.subr.bf16.mxu0 0
        %1485 = vmatpush1.bf16.msra.mxu0 0
        %1486 = vmatprep.subr.bf16.mxu0 0
        %1487 = vmatpush1.bf16.msra.mxu0 0
        %1488 = vmatprep.mubr.bf16.mxu0 0
        %1489 = vmatmul.mubr.bf16.gmra.mrb[0].mxu0 %v1304
        %v1490 = vpop.f32.mrb[0].mxu0
        %v1491 = vadd.f32 0.0, %v1490
        %v1492 = vpop.f32.mrb[0].mxu0
        %v1493 = vadd.f32 0.0, %v1492
        %v1494 = vpop.f32.mrb[0].mxu0
        %v1495 = vpop.f32.mrb[0].mxu0
        %1496 = vdwg.mxu0
        %1497 = vmatprep.subr.bf16.mxu0 0
        %1498 = vmatpush1.bf16.msra.mxu0 %v1331
        %1499 = vmatprep.subr.bf16.mxu0 0
        %1500 = vmatpush1.bf16.msra.mxu0 0
        %1501 = vmatprep.subr.bf16.mxu0 0
        %1502 = vmatpush1.bf16.msra.mxu0 0
        %1503 = vmatprep.subr.bf16.mxu0 0
        %1504 = vmatpush1.bf16.msra.mxu0 0
        %1505 = vmatprep.subr.bf16.mxu0 0
        %1506 = vmatpush1.bf16.msra.mxu0 0
        %1507 = vmatprep.subr.bf16.mxu0 0
        %1508 = vmatpush1.bf16.msra.mxu0 0
        %1509 = vmatprep.subr.bf16.mxu0 0
        %1510 = vmatpush1.bf16.msra.mxu0 0
        %1511 = vmatprep.subr.bf16.mxu0 0
        %1512 = vmatpush1.bf16.msra.mxu0 0
        %1513 = vmatprep.subr.bf16.mxu0 0
        %1514 = vmatpush1.bf16.msra.mxu0 0
        %1515 = vmatprep.subr.bf16.mxu0 0
        %1516 = vmatpush1.bf16.msra.mxu0 0
        %1517 = vmatprep.subr.bf16.mxu0 0
        %1518 = vmatpush1.bf16.msra.mxu0 0
        %1519 = vmatprep.subr.bf16.mxu0 0
        %1520 = vmatpush1.bf16.msra.mxu0 0
        %1521 = vmatprep.subr.bf16.mxu0 0
        %1522 = vmatpush1.bf16.msra.mxu0 0
        %1523 = vmatprep.subr.bf16.mxu0 0
        %1524 = vmatpush1.bf16.msra.mxu0 0
        %1525 = vmatprep.subr.bf16.mxu0 0
        %1526 = vmatpush1.bf16.msra.mxu0 0
        %1527 = vmatprep.subr.bf16.mxu0 0
        %1528 = vmatpush1.bf16.msra.mxu0 0
        %1529 = vmatprep.mubr.bf16.mxu0 0
        %1530 = vmatmul.mubr.bf16.gmra.mrb[0].mxu0 %v1304
        %v1531 = vpop.f32.mrb[0].mxu0
        %v1532 = vadd.f32 0.0, %v1531
        %v1533 = vpop.f32.mrb[0].mxu0
        %v1534 = vpop.f32.mrb[0].mxu0
        %v1535 = vpop.f32.mrb[0].mxu0
        %1536 = vdwg.mxu0
        %v1537 = vadd.f32 %v1264, %v1368
        %v1538 = vadd.f32 %v1265, %v1370
        %v1539 = vadd.f32 %v1266, %v1409
        %v1540 = vadd.f32 %v1267, %v1411
        %v1541 = vadd.f32 %v1268, %v1450
        %v1542 = vadd.f32 %v1269, %v1452
        %v1543 = vadd.f32 %v1270, %v1491
        %v1544 = vadd.f32 %v1271, %v1493
        %v1545 = vadd.f32 %v1272, %v1532
        %1546 = vrot.lane.b32.xlu0 %v192, 92
        %v1547 = vpop.permute.xlu0 %1546
        %1548 = vrot.lane.b32.xlu0 %v200, 92
        %v1549 = vpop.permute.xlu0 %1548
        %1550 = vrot.lane.b32.xlu0 %v199, 92
        %v1551 = vpop.permute.xlu0 %1550
        %1552 = vrot.lane.b32.xlu0 %v201, 92
        %v1553 = vpop.permute.xlu0 %1552
        %1554 = vrot.lane.b32.xlu0 %v209, 92
        %v1555 = vpop.permute.xlu0 %1554
        %1556 = vrot.lane.b32.xlu0 %v217, 92
        %v1557 = vpop.permute.xlu0 %1556
        %1558 = vrot.lane.b32.xlu0 %v216, 92
        %v1559 = vpop.permute.xlu0 %1558
        %1560 = vrot.lane.b32.xlu0 %v218, 92
        %v1561 = vpop.permute.xlu0 %1560
        %1562 = vrot.lane.b32.xlu0 %v225, 92
        %v1563 = vpop.permute.xlu0 %1562
        %1564 = vrot.lane.b32.xlu0 %v226, 92
        %v1565 = vpop.permute.xlu0 %1564
        %vm1566 = vcmask 752640
        %v1567 = vsel %vm1566, %v1547, %v1549
        %v1568 = vsel %vm1566, %v1549, %v1551
        %v1569 = vsel %vm1566, %v1551, %v1553
        %v1570 = vsel %vm1566, %v1553, %v1555
        %v1571 = vsel %vm1566, %v1555, %v1557
        %v1572 = vsel %vm1566, %v1557, %v1559
        %v1573 = vsel %vm1566, %v1559, %v1561
        %v1574 = vsel %vm1566, %v1561, %v1563
        %v1575 = vsel %vm1566, %v1563, %v1565
        %v1577 = vsel %vm257, %v178, 0
        %v1580 = vsel %vm261, %v1567, 0
        %v1583 = vsel %vm261, %v1568, 0
        %v1586 = vsel %vm261, %v1569, 0
        %v1589 = vsel %vm261, %v1570, 0
        %v1592 = vsel %vm261, %v1571, 0
        %v1595 = vsel %vm261, %v1572, 0
        %v1598 = vsel %vm261, %v1573, 0
        %v1601 = vsel %vm261, %v1574, 0
        %v1604 = vsel %vm261, %v1575, 0
        %1606 = vmatprep.subr.bf16.mxu0 %v1583
        %1607 = vmatpush1.bf16.msra.mxu0 %v1580
        %1608 = vmatprep.subr.bf16.mxu0 0
        %1609 = vmatpush1.bf16.msra.mxu0 0
        %1610 = vmatprep.subr.bf16.mxu0 0
        %1611 = vmatpush1.bf16.msra.mxu0 0
        %1612 = vmatprep.subr.bf16.mxu0 0
        %1613 = vmatpush1.bf16.msra.mxu0 0
        %1614 = vmatprep.subr.bf16.mxu0 0
        %1615 = vmatpush1.bf16.msra.mxu0 0
        %1616 = vmatprep.subr.bf16.mxu0 0
        %1617 = vmatpush1.bf16.msra.mxu0 0
        %1618 = vmatprep.subr.bf16.mxu0 0
        %1619 = vmatpush1.bf16.msra.mxu0 0
        %1620 = vmatprep.subr.bf16.mxu0 0
        %1621 = vmatpush1.bf16.msra.mxu0 0
        %1622 = vmatprep.subr.bf16.mxu0 0
        %1623 = vmatpush1.bf16.msra.mxu0 0
        %1624 = vmatprep.subr.bf16.mxu0 0
        %1625 = vmatpush1.bf16.msra.mxu0 0
        %1626 = vmatprep.subr.bf16.mxu0 0
        %1627 = vmatpush1.bf16.msra.mxu0 0
        %1628 = vmatprep.subr.bf16.mxu0 0
        %1629 = vmatpush1.bf16.msra.mxu0 0
        %1630 = vmatprep.subr.bf16.mxu0 0
        %1631 = vmatpush1.bf16.msra.mxu0 0
        %1632 = vmatprep.subr.bf16.mxu0 0
        %1633 = vmatpush1.bf16.msra.mxu0 0
        %1634 = vmatprep.subr.bf16.mxu0 0
        %1635 = vmatpush1.bf16.msra.mxu0 0
        %1636 = vmatprep.subr.bf16.mxu0 0
        %1637 = vmatpush1.bf16.msra.mxu0 0
        %1638 = vmatprep.mubr.bf16.mxu0 0
        %1639 = vmatmul.mubr.bf16.gmra.mrb[0].mxu0 %v1577
        %v1640 = vpop.f32.mrb[0].mxu0
        %v1641 = vadd.f32 0.0, %v1640
        %v1642 = vpop.f32.mrb[0].mxu0
        %v1643 = vadd.f32 0.0, %v1642
        %v1644 = vpop.f32.mrb[0].mxu0
        %v1645 = vpop.f32.mrb[0].mxu0
        %1646 = vdwg.mxu0
        %1647 = vmatprep.subr.bf16.mxu0 %v1589
        %1648 = vmatpush1.bf16.msra.mxu0 %v1586
        %1649 = vmatprep.subr.bf16.mxu0 0
        %1650 = vmatpush1.bf16.msra.mxu0 0
        %1651 = vmatprep.subr.bf16.mxu0 0
        %1652 = vmatpush1.bf16.msra.mxu0 0
        %1653 = vmatprep.subr.bf16.mxu0 0
        %1654 = vmatpush1.bf16.msra.mxu0 0
        %1655 = vmatprep.subr.bf16.mxu0 0
        %1656 = vmatpush1.bf16.msra.mxu0 0
        %1657 = vmatprep.subr.bf16.mxu0 0
        %1658 = vmatpush1.bf16.msra.mxu0 0
        %1659 = vmatprep.subr.bf16.mxu0 0
        %1660 = vmatpush1.bf16.msra.mxu0 0
        %1661 = vmatprep.subr.bf16.mxu0 0
        %1662 = vmatpush1.bf16.msra.mxu0 0
        %1663 = vmatprep.subr.bf16.mxu0 0
        %1664 = vmatpush1.bf16.msra.mxu0 0
        %1665 = vmatprep.subr.bf16.mxu0 0
        %1666 = vmatpush1.bf16.msra.mxu0 0
        %1667 = vmatprep.subr.bf16.mxu0 0
        %1668 = vmatpush1.bf16.msra.mxu0 0
        %1669 = vmatprep.subr.bf16.mxu0 0
        %1670 = vmatpush1.bf16.msra.mxu0 0
        %1671 = vmatprep.subr.bf16.mxu0 0
        %1672 = vmatpush1.bf16.msra.mxu0 0
        %1673 = vmatprep.subr.bf16.mxu0 0
        %1674 = vmatpush1.bf16.msra.mxu0 0
        %1675 = vmatprep.subr.bf16.mxu0 0
        %1676 = vmatpush1.bf16.msra.mxu0 0
        %1677 = vmatprep.subr.bf16.mxu0 0
        %1678 = vmatpush1.bf16.msra.mxu0 0
        %1679 = vmatprep.mubr.bf16.mxu0 0
        %1680 = vmatmul.mubr.bf16.gmra.mrb[0].mxu0 %v1577
        %v1681 = vpop.f32.mrb[0].mxu0
        %v1682 = vadd.f32 0.0, %v1681
        %v1683 = vpop.f32.mrb[0].mxu0
        %v1684 = vadd.f32 0.0, %v1683
        %v1685 = vpop.f32.mrb[0].mxu0
        %v1686 = vpop.f32.mrb[0].mxu0
        %1687 = vdwg.mxu0
        %1688 = vmatprep.subr.bf16.mxu0 %v1595
        %1689 = vmatpush1.bf16.msra.mxu0 %v1592
        %1690 = vmatprep.subr.bf16.mxu0 0
        %1691 = vmatpush1.bf16.msra.mxu0 0
        %1692 = vmatprep.subr.bf16.mxu0 0
        %1693 = vmatpush1.bf16.msra.mxu0 0
        %1694 = vmatprep.subr.bf16.mxu0 0
        %1695 = vmatpush1.bf16.msra.mxu0 0
        %1696 = vmatprep.subr.bf16.mxu0 0
        %1697 = vmatpush1.bf16.msra.mxu0 0
        %1698 = vmatprep.subr.bf16.mxu0 0
        %1699 = vmatpush1.bf16.msra.mxu0 0
        %1700 = vmatprep.subr.bf16.mxu0 0
        %1701 = vmatpush1.bf16.msra.mxu0 0
        %1702 = vmatprep.subr.bf16.mxu0 0
        %1703 = vmatpush1.bf16.msra.mxu0 0
        %1704 = vmatprep.subr.bf16.mxu0 0
        %1705 = vmatpush1.bf16.msra.mxu0 0
        %1706 = vmatprep.subr.bf16.mxu0 0
        %1707 = vmatpush1.bf16.msra.mxu0 0
        %1708 = vmatprep.subr.bf16.mxu0 0
        %1709 = vmatpush1.bf16.msra.mxu0 0
        %1710 = vmatprep.subr.bf16.mxu0 0
        %1711 = vmatpush1.bf16.msra.mxu0 0
        %1712 = vmatprep.subr.bf16.mxu0 0
        %1713 = vmatpush1.bf16.msra.mxu0 0
        %1714 = vmatprep.subr.bf16.mxu0 0
        %1715 = vmatpush1.bf16.msra.mxu0 0
        %1716 = vmatprep.subr.bf16.mxu0 0
        %1717 = vmatpush1.bf16.msra.mxu0 0
        %1718 = vmatprep.subr.bf16.mxu0 0
        %1719 = vmatpush1.bf16.msra.mxu0 0
        %1720 = vmatprep.mubr.bf16.mxu0 0
        %1721 = vmatmul.mubr.bf16.gmra.mrb[0].mxu0 %v1577
        %v1722 = vpop.f32.mrb[0].mxu0
        %v1723 = vadd.f32 0.0, %v1722
        %v1724 = vpop.f32.mrb[0].mxu0
        %v1725 = vadd.f32 0.0, %v1724
        %v1726 = vpop.f32.mrb[0].mxu0
        %v1727 = vpop.f32.mrb[0].mxu0
        %1728 = vdwg.mxu0
        %1729 = vmatprep.subr.bf16.mxu0 %v1601
        %1730 = vmatpush1.bf16.msra.mxu0 %v1598
        %1731 = vmatprep.subr.bf16.mxu0 0
        %1732 = vmatpush1.bf16.msra.mxu0 0
        %1733 = vmatprep.subr.bf16.mxu0 0
        %1734 = vmatpush1.bf16.msra.mxu0 0
        %1735 = vmatprep.subr.bf16.mxu0 0
        %1736 = vmatpush1.bf16.msra.mxu0 0
        %1737 = vmatprep.subr.bf16.mxu0 0
        %1738 = vmatpush1.bf16.msra.mxu0 0
        %1739 = vmatprep.subr.bf16.mxu0 0
        %1740 = vmatpush1.bf16.msra.mxu0 0
        %1741 = vmatprep.subr.bf16.mxu0 0
        %1742 = vmatpush1.bf16.msra.mxu0 0
        %1743 = vmatprep.subr.bf16.mxu0 0
        %1744 = vmatpush1.bf16.msra.mxu0 0
        %1745 = vmatprep.subr.bf16.mxu0 0
        %1746 = vmatpush1.bf16.msra.mxu0 0
        %1747 = vmatprep.subr.bf16.mxu0 0
        %1748 = vmatpush1.bf16.msra.mxu0 0
        %1749 = vmatprep.subr.bf16.mxu0 0
        %1750 = vmatpush1.bf16.msra.mxu0 0
        %1751 = vmatprep.subr.bf16.mxu0 0
        %1752 = vmatpush1.bf16.msra.mxu0 0
        %1753 = vmatprep.subr.bf16.mxu0 0
        %1754 = vmatpush1.bf16.msra.mxu0 0
        %1755 = vmatprep.subr.bf16.mxu0 0
        %1756 = vmatpush1.bf16.msra.mxu0 0
        %1757 = vmatprep.subr.bf16.mxu0 0
        %1758 = vmatpush1.bf16.msra.mxu0 0
        %1759 = vmatprep.subr.bf16.mxu0 0
        %1760 = vmatpush1.bf16.msra.mxu0 0
        %1761 = vmatprep.mubr.bf16.mxu0 0
        %1762 = vmatmul.mubr.bf16.gmra.mrb[0].mxu0 %v1577
        %v1763 = vpop.f32.mrb[0].mxu0
        %v1764 = vadd.f32 0.0, %v1763
        %v1765 = vpop.f32.mrb[0].mxu0
        %v1766 = vadd.f32 0.0, %v1765
        %v1767 = vpop.f32.mrb[0].mxu0
        %v1768 = vpop.f32.mrb[0].mxu0
        %1769 = vdwg.mxu0
        %1770 = vmatprep.subr.bf16.mxu0 0
        %1771 = vmatpush1.bf16.msra.mxu0 %v1604
        %1772 = vmatprep.subr.bf16.mxu0 0
        %1773 = vmatpush1.bf16.msra.mxu0 0
        %1774 = vmatprep.subr.bf16.mxu0 0
        %1775 = vmatpush1.bf16.msra.mxu0 0
        %1776 = vmatprep.subr.bf16.mxu0 0
        %1777 = vmatpush1.bf16.msra.mxu0 0
        %1778 = vmatprep.subr.bf16.mxu0 0
        %1779 = vmatpush1.bf16.msra.mxu0 0
        %1780 = vmatprep.subr.bf16.mxu0 0
        %1781 = vmatpush1.bf16.msra.mxu0 0
        %1782 = vmatprep.subr.bf16.mxu0 0
        %1783 = vmatpush1.bf16.msra.mxu0 0
        %1784 = vmatprep.subr.bf16.mxu0 0
        %1785 = vmatpush1.bf16.msra.mxu0 0
        %1786 = vmatprep.subr.bf16.mxu0 0
        %1787 = vmatpush1.bf16.msra.mxu0 0
        %1788 = vmatprep.subr.bf16.mxu0 0
        %1789 = vmatpush1.bf16.msra.mxu0 0
        %1790 = vmatprep.subr.bf16.mxu0 0
        %1791 = vmatpush1.bf16.msra.mxu0 0
        %1792 = vmatprep.subr.bf16.mxu0 0
        %1793 = vmatpush1.bf16.msra.mxu0 0
        %1794 = vmatprep.subr.bf16.mxu0 0
        %1795 = vmatpush1.bf16.msra.mxu0 0
        %1796 = vmatprep.subr.bf16.mxu0 0
        %1797 = vmatpush1.bf16.msra.mxu0 0
        %1798 = vmatprep.subr.bf16.mxu0 0
        %1799 = vmatpush1.bf16.msra.mxu0 0
        %1800 = vmatprep.subr.bf16.mxu0 0
        %1801 = vmatpush1.bf16.msra.mxu0 0
        %1802 = vmatprep.mubr.bf16.mxu0 0
        %1803 = vmatmul.mubr.bf16.gmra.mrb[0].mxu0 %v1577
        %v1804 = vpop.f32.mrb[0].mxu0
        %v1805 = vadd.f32 0.0, %v1804
        %v1806 = vpop.f32.mrb[0].mxu0
        %v1807 = vpop.f32.mrb[0].mxu0
        %v1808 = vpop.f32.mrb[0].mxu0
        %1809 = vdwg.mxu0
        %v1810 = vadd.f32 %v1537, %v1641
        %v1811 = vadd.f32 %v1538, %v1643
        %v1812 = vadd.f32 %v1539, %v1682
        %v1813 = vadd.f32 %v1540, %v1684
        %v1814 = vadd.f32 %v1541, %v1723
        %v1815 = vadd.f32 %v1542, %v1725
        %v1816 = vadd.f32 %v1543, %v1764
        %v1817 = vadd.f32 %v1544, %v1766
        %v1818 = vadd.f32 %v1545, %v1805
        %1819 = vrot.lane.b32.xlu0 %v192, 60
        %v1820 = vpop.permute.xlu0 %1819
        %1821 = vrot.lane.b32.xlu0 %v200, 60
        %v1822 = vpop.permute.xlu0 %1821
        %1823 = vrot.lane.b32.xlu0 %v199, 60
        %v1824 = vpop.permute.xlu0 %1823
        %1825 = vrot.lane.b32.xlu0 %v201, 60
        %v1826 = vpop.permute.xlu0 %1825
        %1827 = vrot.lane.b32.xlu0 %v209, 60
        %v1828 = vpop.permute.xlu0 %1827
        %1829 = vrot.lane.b32.xlu0 %v217, 60
        %v1830 = vpop.permute.xlu0 %1829
        %1831 = vrot.lane.b32.xlu0 %v216, 60
        %v1832 = vpop.permute.xlu0 %1831
        %1833 = vrot.lane.b32.xlu0 %v218, 60
        %v1834 = vpop.permute.xlu0 %1833
        %1835 = vrot.lane.b32.xlu0 %v225, 60
        %v1836 = vpop.permute.xlu0 %1835
        %1837 = vrot.lane.b32.xlu0 %v226, 60
        %v1838 = vpop.permute.xlu0 %1837
        %vm1839 = vcmask 490496
        %v1840 = vsel %vm1839, %v1820, %v1822
        %v1841 = vsel %vm1839, %v1822, %v1824
        %v1842 = vsel %vm1839, %v1824, %v1826
        %v1843 = vsel %vm1839, %v1826, %v1828
        %v1844 = vsel %vm1839, %v1828, %v1830
        %v1845 = vsel %vm1839, %v1830, %v1832
        %v1846 = vsel %vm1839, %v1832, %v1834
        %v1847 = vsel %vm1839, %v1834, %v1836
        %v1848 = vsel %vm1839, %v1836, %v1838
        %v1850 = vsel %vm257, %v179, 0
        %v1853 = vsel %vm261, %v1840, 0
        %v1856 = vsel %vm261, %v1841, 0
        %v1859 = vsel %vm261, %v1842, 0
        %v1862 = vsel %vm261, %v1843, 0
        %v1865 = vsel %vm261, %v1844, 0
        %v1868 = vsel %vm261, %v1845, 0
        %v1871 = vsel %vm261, %v1846, 0
        %v1874 = vsel %vm261, %v1847, 0
        %v1877 = vsel %vm261, %v1848, 0
        %1879 = vmatprep.subr.bf16.mxu0 %v1856
        %1880 = vmatpush1.bf16.msra.mxu0 %v1853
        %1881 = vmatprep.subr.bf16.mxu0 0
        %1882 = vmatpush1.bf16.msra.mxu0 0
        %1883 = vmatprep.subr.bf16.mxu0 0
        %1884 = vmatpush1.bf16.msra.mxu0 0
        %1885 = vmatprep.subr.bf16.mxu0 0
        %1886 = vmatpush1.bf16.msra.mxu0 0
        %1887 = vmatprep.subr.bf16.mxu0 0
        %1888 = vmatpush1.bf16.msra.mxu0 0
        %1889 = vmatprep.subr.bf16.mxu0 0
        %1890 = vmatpush1.bf16.msra.mxu0 0
        %1891 = vmatprep.subr.bf16.mxu0 0
        %1892 = vmatpush1.bf16.msra.mxu0 0
        %1893 = vmatprep.subr.bf16.mxu0 0
        %1894 = vmatpush1.bf16.msra.mxu0 0
        %1895 = vmatprep.subr.bf16.mxu0 0
        %1896 = vmatpush1.bf16.msra.mxu0 0
        %1897 = vmatprep.subr.bf16.mxu0 0
        %1898 = vmatpush1.bf16.msra.mxu0 0
        %1899 = vmatprep.subr.bf16.mxu0 0
        %1900 = vmatpush1.bf16.msra.mxu0 0
        %1901 = vmatprep.subr.bf16.mxu0 0
        %1902 = vmatpush1.bf16.msra.mxu0 0
        %1903 = vmatprep.subr.bf16.mxu0 0
        %1904 = vmatpush1.bf16.msra.mxu0 0
        %1905 = vmatprep.subr.bf16.mxu0 0
        %1906 = vmatpush1.bf16.msra.mxu0 0
        %1907 = vmatprep.subr.bf16.mxu0 0
        %1908 = vmatpush1.bf16.msra.mxu0 0
        %1909 = vmatprep.subr.bf16.mxu0 0
        %1910 = vmatpush1.bf16.msra.mxu0 0
        %1911 = vmatprep.mubr.bf16.mxu0 0
        %1912 = vmatmul.mubr.bf16.gmra.mrb[0].mxu0 %v1850
        %v1913 = vpop.f32.mrb[0].mxu0
        %v1914 = vadd.f32 0.0, %v1913
        %v1915 = vpop.f32.mrb[0].mxu0
        %v1916 = vadd.f32 0.0, %v1915
        %v1917 = vpop.f32.mrb[0].mxu0
        %v1918 = vpop.f32.mrb[0].mxu0
        %1919 = vdwg.mxu0
        %1920 = vmatprep.subr.bf16.mxu0 %v1862
        %1921 = vmatpush1.bf16.msra.mxu0 %v1859
        %1922 = vmatprep.subr.bf16.mxu0 0
        %1923 = vmatpush1.bf16.msra.mxu0 0
        %1924 = vmatprep.subr.bf16.mxu0 0
        %1925 = vmatpush1.bf16.msra.mxu0 0
        %1926 = vmatprep.subr.bf16.mxu0 0
        %1927 = vmatpush1.bf16.msra.mxu0 0
        %1928 = vmatprep.subr.bf16.mxu0 0
        %1929 = vmatpush1.bf16.msra.mxu0 0
        %1930 = vmatprep.subr.bf16.mxu0 0
        %1931 = vmatpush1.bf16.msra.mxu0 0
        %1932 = vmatprep.subr.bf16.mxu0 0
        %1933 = vmatpush1.bf16.msra.mxu0 0
        %1934 = vmatprep.subr.bf16.mxu0 0
        %1935 = vmatpush1.bf16.msra.mxu0 0
        %1936 = vmatprep.subr.bf16.mxu0 0
        %1937 = vmatpush1.bf16.msra.mxu0 0
        %1938 = vmatprep.subr.bf16.mxu0 0
        %1939 = vmatpush1.bf16.msra.mxu0 0
        %1940 = vmatprep.subr.bf16.mxu0 0
        %1941 = vmatpush1.bf16.msra.mxu0 0
        %1942 = vmatprep.subr.bf16.mxu0 0
        %1943 = vmatpush1.bf16.msra.mxu0 0
        %1944 = vmatprep.subr.bf16.mxu0 0
        %1945 = vmatpush1.bf16.msra.mxu0 0
        %1946 = vmatprep.subr.bf16.mxu0 0
        %1947 = vmatpush1.bf16.msra.mxu0 0
        %1948 = vmatprep.subr.bf16.mxu0 0
        %1949 = vmatpush1.bf16.msra.mxu0 0
        %1950 = vmatprep.subr.bf16.mxu0 0
        %1951 = vmatpush1.bf16.msra.mxu0 0
        %1952 = vmatprep.mubr.bf16.mxu0 0
        %1953 = vmatmul.mubr.bf16.gmra.mrb[0].mxu0 %v1850
        %v1954 = vpop.f32.mrb[0].mxu0
        %v1955 = vadd.f32 0.0, %v1954
        %v1956 = vpop.f32.mrb[0].mxu0
        %v1957 = vadd.f32 0.0, %v1956
        %v1958 = vpop.f32.mrb[0].mxu0
        %v1959 = vpop.f32.mrb[0].mxu0
        %1960 = vdwg.mxu0
        %1961 = vmatprep.subr.bf16.mxu0 %v1868
        %1962 = vmatpush1.bf16.msra.mxu0 %v1865
        %1963 = vmatprep.subr.bf16.mxu0 0
        %1964 = vmatpush1.bf16.msra.mxu0 0
        %1965 = vmatprep.subr.bf16.mxu0 0
        %1966 = vmatpush1.bf16.msra.mxu0 0
        %1967 = vmatprep.subr.bf16.mxu0 0
        %1968 = vmatpush1.bf16.msra.mxu0 0
        %1969 = vmatprep.subr.bf16.mxu0 0
        %1970 = vmatpush1.bf16.msra.mxu0 0
        %1971 = vmatprep.subr.bf16.mxu0 0
        %1972 = vmatpush1.bf16.msra.mxu0 0
        %1973 = vmatprep.subr.bf16.mxu0 0
        %1974 = vmatpush1.bf16.msra.mxu0 0
        %1975 = vmatprep.subr.bf16.mxu0 0
        %1976 = vmatpush1.bf16.msra.mxu0 0
        %1977 = vmatprep.subr.bf16.mxu0 0
        %1978 = vmatpush1.bf16.msra.mxu0 0
        %1979 = vmatprep.subr.bf16.mxu0 0
        %1980 = vmatpush1.bf16.msra.mxu0 0
        %1981 = vmatprep.subr.bf16.mxu0 0
        %1982 = vmatpush1.bf16.msra.mxu0 0
        %1983 = vmatprep.subr.bf16.mxu0 0
        %1984 = vmatpush1.bf16.msra.mxu0 0
        %1985 = vmatprep.subr.bf16.mxu0 0
        %1986 = vmatpush1.bf16.msra.mxu0 0
        %1987 = vmatprep.subr.bf16.mxu0 0
        %1988 = vmatpush1.bf16.msra.mxu0 0
        %1989 = vmatprep.subr.bf16.mxu0 0
        %1990 = vmatpush1.bf16.msra.mxu0 0
        %1991 = vmatprep.subr.bf16.mxu0 0
        %1992 = vmatpush1.bf16.msra.mxu0 0
        %1993 = vmatprep.mubr.bf16.mxu0 0
        %1994 = vmatmul.mubr.bf16.gmra.mrb[0].mxu0 %v1850
        %v1995 = vpop.f32.mrb[0].mxu0
        %v1996 = vadd.f32 0.0, %v1995
        %v1997 = vpop.f32.mrb[0].mxu0
        %v1998 = vadd.f32 0.0, %v1997
        %v1999 = vpop.f32.mrb[0].mxu0
        %v2000 = vpop.f32.mrb[0].mxu0
        %2001 = vdwg.mxu0
        %2002 = vmatprep.subr.bf16.mxu0 %v1874
        %2003 = vmatpush1.bf16.msra.mxu0 %v1871
        %2004 = vmatprep.subr.bf16.mxu0 0
        %2005 = vmatpush1.bf16.msra.mxu0 0
        %2006 = vmatprep.subr.bf16.mxu0 0
        %2007 = vmatpush1.bf16.msra.mxu0 0
        %2008 = vmatprep.subr.bf16.mxu0 0
        %2009 = vmatpush1.bf16.msra.mxu0 0
        %2010 = vmatprep.subr.bf16.mxu0 0
        %2011 = vmatpush1.bf16.msra.mxu0 0
        %2012 = vmatprep.subr.bf16.mxu0 0
        %2013 = vmatpush1.bf16.msra.mxu0 0
        %2014 = vmatprep.subr.bf16.mxu0 0
        %2015 = vmatpush1.bf16.msra.mxu0 0
        %2016 = vmatprep.subr.bf16.mxu0 0
        %2017 = vmatpush1.bf16.msra.mxu0 0
        %2018 = vmatprep.subr.bf16.mxu0 0
        %2019 = vmatpush1.bf16.msra.mxu0 0
        %2020 = vmatprep.subr.bf16.mxu0 0
        %2021 = vmatpush1.bf16.msra.mxu0 0
        %2022 = vmatprep.subr.bf16.mxu0 0
        %2023 = vmatpush1.bf16.msra.mxu0 0
        %2024 = vmatprep.subr.bf16.mxu0 0
        %2025 = vmatpush1.bf16.msra.mxu0 0
        %2026 = vmatprep.subr.bf16.mxu0 0
        %2027 = vmatpush1.bf16.msra.mxu0 0
        %2028 = vmatprep.subr.bf16.mxu0 0
        %2029 = vmatpush1.bf16.msra.mxu0 0
        %2030 = vmatprep.subr.bf16.mxu0 0
        %2031 = vmatpush1.bf16.msra.mxu0 0
        %2032 = vmatprep.subr.bf16.mxu0 0
        %2033 = vmatpush1.bf16.msra.mxu0 0
        %2034 = vmatprep.mubr.bf16.mxu0 0
        %2035 = vmatmul.mubr.bf16.gmra.mrb[0].mxu0 %v1850
        %v2036 = vpop.f32.mrb[0].mxu0
        %v2037 = vadd.f32 0.0, %v2036
        %v2038 = vpop.f32.mrb[0].mxu0
        %v2039 = vadd.f32 0.0, %v2038
        %v2040 = vpop.f32.mrb[0].mxu0
        %v2041 = vpop.f32.mrb[0].mxu0
        %2042 = vdwg.mxu0
        %2043 = vmatprep.subr.bf16.mxu0 0
        %2044 = vmatpush1.bf16.msra.mxu0 %v1877
        %2045 = vmatprep.subr.bf16.mxu0 0
        %2046 = vmatpush1.bf16.msra.mxu0 0
        %2047 = vmatprep.subr.bf16.mxu0 0
        %2048 = vmatpush1.bf16.msra.mxu0 0
        %2049 = vmatprep.subr.bf16.mxu0 0
        %2050 = vmatpush1.bf16.msra.mxu0 0
        %2051 = vmatprep.subr.bf16.mxu0 0
        %2052 = vmatpush1.bf16.msra.mxu0 0
        %2053 = vmatprep.subr.bf16.mxu0 0
        %2054 = vmatpush1.bf16.msra.mxu0 0
        %2055 = vmatprep.subr.bf16.mxu0 0
        %2056 = vmatpush1.bf16.msra.mxu0 0
        %2057 = vmatprep.subr.bf16.mxu0 0
        %2058 = vmatpush1.bf16.msra.mxu0 0
        %2059 = vmatprep.subr.bf16.mxu0 0
        %2060 = vmatpush1.bf16.msra.mxu0 0
        %2061 = vmatprep.subr.bf16.mxu0 0
        %2062 = vmatpush1.bf16.msra.mxu0 0
        %2063 = vmatprep.subr.bf16.mxu0 0
        %2064 = vmatpush1.bf16.msra.mxu0 0
        %2065 = vmatprep.subr.bf16.mxu0 0
        %2066 = vmatpush1.bf16.msra.mxu0 0
        %2067 = vmatprep.subr.bf16.mxu0 0
        %2068 = vmatpush1.bf16.msra.mxu0 0
        %2069 = vmatprep.subr.bf16.mxu0 0
        %2070 = vmatpush1.bf16.msra.mxu0 0
        %2071 = vmatprep.subr.bf16.mxu0 0
        %2072 = vmatpush1.bf16.msra.mxu0 0
        %2073 = vmatprep.subr.bf16.mxu0 0
        %2074 = vmatpush1.bf16.msra.mxu0 0
        %2075 = vmatprep.mubr.bf16.mxu0 0
        %2076 = vmatmul.mubr.bf16.gmra.mrb[0].mxu0 %v1850
        %v2077 = vpop.f32.mrb[0].mxu0
        %v2078 = vadd.f32 0.0, %v2077
        %v2079 = vpop.f32.mrb[0].mxu0
        %v2080 = vpop.f32.mrb[0].mxu0
        %v2081 = vpop.f32.mrb[0].mxu0
        %2082 = vdwg.mxu0
        %v2083 = vadd.f32 %v1810, %v1914
        %v2084 = vadd.f32 %v1811, %v1916
        %v2085 = vadd.f32 %v1812, %v1955
        %v2086 = vadd.f32 %v1813, %v1957
        %v2087 = vadd.f32 %v1814, %v1996
        %v2088 = vadd.f32 %v1815, %v1998
        %v2089 = vadd.f32 %v1816, %v2037
        %v2090 = vadd.f32 %v1817, %v2039
        %v2091 = vadd.f32 %v1818, %v2078
        %2092 = vrot.lane.b32.xlu0 %v192, 59
        %v2093 = vpop.permute.xlu0 %2092
        %2094 = vrot.lane.b32.xlu0 %v200, 59
        %v2095 = vpop.permute.xlu0 %2094
        %2096 = vrot.lane.b32.xlu0 %v199, 59
        %v2097 = vpop.permute.xlu0 %2096
        %2098 = vrot.lane.b32.xlu0 %v201, 59
        %v2099 = vpop.permute.xlu0 %2098
        %2100 = vrot.lane.b32.xlu0 %v209, 59
        %v2101 = vpop.permute.xlu0 %2100
        %2102 = vrot.lane.b32.xlu0 %v217, 59
        %v2103 = vpop.permute.xlu0 %2102
        %2104 = vrot.lane.b32.xlu0 %v216, 59
        %v2105 = vpop.permute.xlu0 %2104
        %2106 = vrot.lane.b32.xlu0 %v218, 59
        %v2107 = vpop.permute.xlu0 %2106
        %2108 = vrot.lane.b32.xlu0 %v225, 59
        %v2109 = vpop.permute.xlu0 %2108
        %2110 = vrot.lane.b32.xlu0 %v226, 59
        %v2111 = vpop.permute.xlu0 %2110
        %vm2112 = vcmask 482304
        %v2113 = vsel %vm2112, %v2093, %v2095
        %v2114 = vsel %vm2112, %v2095, %v2097
        %v2115 = vsel %vm2112, %v2097, %v2099
        %v2116 = vsel %vm2112, %v2099, %v2101
        %v2117 = vsel %vm2112, %v2101, %v2103
        %v2118 = vsel %vm2112, %v2103, %v2105
        %v2119 = vsel %vm2112, %v2105, %v2107
        %v2120 = vsel %vm2112, %v2107, %v2109
        %v2121 = vsel %vm2112, %v2109, %v2111
        %v2123 = vsel %vm257, %v180, 0
        %v2126 = vsel %vm261, %v2113, 0
        %v2129 = vsel %vm261, %v2114, 0
        %v2132 = vsel %vm261, %v2115, 0
        %v2135 = vsel %vm261, %v2116, 0
        %v2138 = vsel %vm261, %v2117, 0
        %v2141 = vsel %vm261, %v2118, 0
        %v2144 = vsel %vm261, %v2119, 0
        %v2147 = vsel %vm261, %v2120, 0
        %v2150 = vsel %vm261, %v2121, 0
        %2152 = vmatprep.subr.bf16.mxu0 %v2129
        %2153 = vmatpush1.bf16.msra.mxu0 %v2126
        %2154 = vmatprep.subr.bf16.mxu0 0
        %2155 = vmatpush1.bf16.msra.mxu0 0
        %2156 = vmatprep.subr.bf16.mxu0 0
        %2157 = vmatpush1.bf16.msra.mxu0 0
        %2158 = vmatprep.subr.bf16.mxu0 0
        %2159 = vmatpush1.bf16.msra.mxu0 0
        %2160 = vmatprep.subr.bf16.mxu0 0
        %2161 = vmatpush1.bf16.msra.mxu0 0
        %2162 = vmatprep.subr.bf16.mxu0 0
        %2163 = vmatpush1.bf16.msra.mxu0 0
        %2164 = vmatprep.subr.bf16.mxu0 0
        %2165 = vmatpush1.bf16.msra.mxu0 0
        %2166 = vmatprep.subr.bf16.mxu0 0
        %2167 = vmatpush1.bf16.msra.mxu0 0
        %2168 = vmatprep.subr.bf16.mxu0 0
        %2169 = vmatpush1.bf16.msra.mxu0 0
        %2170 = vmatprep.subr.bf16.mxu0 0
        %2171 = vmatpush1.bf16.msra.mxu0 0
        %2172 = vmatprep.subr.bf16.mxu0 0
        %2173 = vmatpush1.bf16.msra.mxu0 0
        %2174 = vmatprep.subr.bf16.mxu0 0
        %2175 = vmatpush1.bf16.msra.mxu0 0
        %2176 = vmatprep.subr.bf16.mxu0 0
        %2177 = vmatpush1.bf16.msra.mxu0 0
        %2178 = vmatprep.subr.bf16.mxu0 0
        %2179 = vmatpush1.bf16.msra.mxu0 0
        %2180 = vmatprep.subr.bf16.mxu0 0
        %2181 = vmatpush1.bf16.msra.mxu0 0
        %2182 = vmatprep.subr.bf16.mxu0 0
        %2183 = vmatpush1.bf16.msra.mxu0 0
        %2184 = vmatprep.mubr.bf16.mxu0 0
        %2185 = vmatmul.mubr.bf16.gmra.mrb[0].mxu0 %v2123
        %v2186 = vpop.f32.mrb[0].mxu0
        %v2187 = vadd.f32 0.0, %v2186
        %v2188 = vpop.f32.mrb[0].mxu0
        %v2189 = vadd.f32 0.0, %v2188
        %v2190 = vpop.f32.mrb[0].mxu0
        %v2191 = vpop.f32.mrb[0].mxu0
        %2192 = vdwg.mxu0
        %2193 = vmatprep.subr.bf16.mxu0 %v2135
        %2194 = vmatpush1.bf16.msra.mxu0 %v2132
        %2195 = vmatprep.subr.bf16.mxu0 0
        %2196 = vmatpush1.bf16.msra.mxu0 0
        %2197 = vmatprep.subr.bf16.mxu0 0
        %2198 = vmatpush1.bf16.msra.mxu0 0
        %2199 = vmatprep.subr.bf16.mxu0 0
        %2200 = vmatpush1.bf16.msra.mxu0 0
        %2201 = vmatprep.subr.bf16.mxu0 0
        %2202 = vmatpush1.bf16.msra.mxu0 0
        %2203 = vmatprep.subr.bf16.mxu0 0
        %2204 = vmatpush1.bf16.msra.mxu0 0
        %2205 = vmatprep.subr.bf16.mxu0 0
        %2206 = vmatpush1.bf16.msra.mxu0 0
        %2207 = vmatprep.subr.bf16.mxu0 0
        %2208 = vmatpush1.bf16.msra.mxu0 0
        %2209 = vmatprep.subr.bf16.mxu0 0
        %2210 = vmatpush1.bf16.msra.mxu0 0
        %2211 = vmatprep.subr.bf16.mxu0 0
        %2212 = vmatpush1.bf16.msra.mxu0 0
        %2213 = vmatprep.subr.bf16.mxu0 0
        %2214 = vmatpush1.bf16.msra.mxu0 0
        %2215 = vmatprep.subr.bf16.mxu0 0
        %2216 = vmatpush1.bf16.msra.mxu0 0
        %2217 = vmatprep.subr.bf16.mxu0 0
        %2218 = vmatpush1.bf16.msra.mxu0 0
        %2219 = vmatprep.subr.bf16.mxu0 0
        %2220 = vmatpush1.bf16.msra.mxu0 0
        %2221 = vmatprep.subr.bf16.mxu0 0
        %2222 = vmatpush1.bf16.msra.mxu0 0
        %2223 = vmatprep.subr.bf16.mxu0 0
        %2224 = vmatpush1.bf16.msra.mxu0 0
        %2225 = vmatprep.mubr.bf16.mxu0 0
        %2226 = vmatmul.mubr.bf16.gmra.mrb[0].mxu0 %v2123
        %v2227 = vpop.f32.mrb[0].mxu0
        %v2228 = vadd.f32 0.0, %v2227
        %v2229 = vpop.f32.mrb[0].mxu0
        %v2230 = vadd.f32 0.0, %v2229
        %v2231 = vpop.f32.mrb[0].mxu0
        %v2232 = vpop.f32.mrb[0].mxu0
        %2233 = vdwg.mxu0
        %2234 = vmatprep.subr.bf16.mxu0 %v2141
        %2235 = vmatpush1.bf16.msra.mxu0 %v2138
        %2236 = vmatprep.subr.bf16.mxu0 0
        %2237 = vmatpush1.bf16.msra.mxu0 0
        %2238 = vmatprep.subr.bf16.mxu0 0
        %2239 = vmatpush1.bf16.msra.mxu0 0
        %2240 = vmatprep.subr.bf16.mxu0 0
        %2241 = vmatpush1.bf16.msra.mxu0 0
        %2242 = vmatprep.subr.bf16.mxu0 0
        %2243 = vmatpush1.bf16.msra.mxu0 0
        %2244 = vmatprep.subr.bf16.mxu0 0
        %2245 = vmatpush1.bf16.msra.mxu0 0
        %2246 = vmatprep.subr.bf16.mxu0 0
        %2247 = vmatpush1.bf16.msra.mxu0 0
        %2248 = vmatprep.subr.bf16.mxu0 0
        %2249 = vmatpush1.bf16.msra.mxu0 0
        %2250 = vmatprep.subr.bf16.mxu0 0
        %2251 = vmatpush1.bf16.msra.mxu0 0
        %2252 = vmatprep.subr.bf16.mxu0 0
        %2253 = vmatpush1.bf16.msra.mxu0 0
        %2254 = vmatprep.subr.bf16.mxu0 0
        %2255 = vmatpush1.bf16.msra.mxu0 0
        %2256 = vmatprep.subr.bf16.mxu0 0
        %2257 = vmatpush1.bf16.msra.mxu0 0
        %2258 = vmatprep.subr.bf16.mxu0 0
        %2259 = vmatpush1.bf16.msra.mxu0 0
        %2260 = vmatprep.subr.bf16.mxu0 0
        %2261 = vmatpush1.bf16.msra.mxu0 0
        %2262 = vmatprep.subr.bf16.mxu0 0
        %2263 = vmatpush1.bf16.msra.mxu0 0
        %2264 = vmatprep.subr.bf16.mxu0 0
        %2265 = vmatpush1.bf16.msra.mxu0 0
        %2266 = vmatprep.mubr.bf16.mxu0 0
        %2267 = vmatmul.mubr.bf16.gmra.mrb[0].mxu0 %v2123
        %v2268 = vpop.f32.mrb[0].mxu0
        %v2269 = vadd.f32 0.0, %v2268
        %v2270 = vpop.f32.mrb[0].mxu0
        %v2271 = vadd.f32 0.0, %v2270
        %v2272 = vpop.f32.mrb[0].mxu0
        %v2273 = vpop.f32.mrb[0].mxu0
        %2274 = vdwg.mxu0
        %2275 = vmatprep.subr.bf16.mxu0 %v2147
        %2276 = vmatpush1.bf16.msra.mxu0 %v2144
        %2277 = vmatprep.subr.bf16.mxu0 0
        %2278 = vmatpush1.bf16.msra.mxu0 0
        %2279 = vmatprep.subr.bf16.mxu0 0
        %2280 = vmatpush1.bf16.msra.mxu0 0
        %2281 = vmatprep.subr.bf16.mxu0 0
        %2282 = vmatpush1.bf16.msra.mxu0 0
        %2283 = vmatprep.subr.bf16.mxu0 0
        %2284 = vmatpush1.bf16.msra.mxu0 0
        %2285 = vmatprep.subr.bf16.mxu0 0
        %2286 = vmatpush1.bf16.msra.mxu0 0
        %2287 = vmatprep.subr.bf16.mxu0 0
        %2288 = vmatpush1.bf16.msra.mxu0 0
        %2289 = vmatprep.subr.bf16.mxu0 0
        %2290 = vmatpush1.bf16.msra.mxu0 0
        %2291 = vmatprep.subr.bf16.mxu0 0
        %2292 = vmatpush1.bf16.msra.mxu0 0
        %2293 = vmatprep.subr.bf16.mxu0 0
        %2294 = vmatpush1.bf16.msra.mxu0 0
        %2295 = vmatprep.subr.bf16.mxu0 0
        %2296 = vmatpush1.bf16.msra.mxu0 0
        %2297 = vmatprep.subr.bf16.mxu0 0
        %2298 = vmatpush1.bf16.msra.mxu0 0
        %2299 = vmatprep.subr.bf16.mxu0 0
        %2300 = vmatpush1.bf16.msra.mxu0 0
        %2301 = vmatprep.subr.bf16.mxu0 0
        %2302 = vmatpush1.bf16.msra.mxu0 0
        %2303 = vmatprep.subr.bf16.mxu0 0
        %2304 = vmatpush1.bf16.msra.mxu0 0
        %2305 = vmatprep.subr.bf16.mxu0 0
        %2306 = vmatpush1.bf16.msra.mxu0 0
        %2307 = vmatprep.mubr.bf16.mxu0 0
        %2308 = vmatmul.mubr.bf16.gmra.mrb[0].mxu0 %v2123
        %v2309 = vpop.f32.mrb[0].mxu0
        %v2310 = vadd.f32 0.0, %v2309
        %v2311 = vpop.f32.mrb[0].mxu0
        %v2312 = vadd.f32 0.0, %v2311
        %v2313 = vpop.f32.mrb[0].mxu0
        %v2314 = vpop.f32.mrb[0].mxu0
        %2315 = vdwg.mxu0
        %2316 = vmatprep.subr.bf16.mxu0 0
        %2317 = vmatpush1.bf16.msra.mxu0 %v2150
        %2318 = vmatprep.subr.bf16.mxu0 0
        %2319 = vmatpush1.bf16.msra.mxu0 0
        %2320 = vmatprep.subr.bf16.mxu0 0
        %2321 = vmatpush1.bf16.msra.mxu0 0
        %2322 = vmatprep.subr.bf16.mxu0 0
        %2323 = vmatpush1.bf16.msra.mxu0 0
        %2324 = vmatprep.subr.bf16.mxu0 0
        %2325 = vmatpush1.bf16.msra.mxu0 0
        %2326 = vmatprep.subr.bf16.mxu0 0
        %2327 = vmatpush1.bf16.msra.mxu0 0
        %2328 = vmatprep.subr.bf16.mxu0 0
        %2329 = vmatpush1.bf16.msra.mxu0 0
        %2330 = vmatprep.subr.bf16.mxu0 0
        %2331 = vmatpush1.bf16.msra.mxu0 0
        %2332 = vmatprep.subr.bf16.mxu0 0
        %2333 = vmatpush1.bf16.msra.mxu0 0
        %2334 = vmatprep.subr.bf16.mxu0 0
        %2335 = vmatpush1.bf16.msra.mxu0 0
        %2336 = vmatprep.subr.bf16.mxu0 0
        %2337 = vmatpush1.bf16.msra.mxu0 0
        %2338 = vmatprep.subr.bf16.mxu0 0
        %2339 = vmatpush1.bf16.msra.mxu0 0
        %2340 = vmatprep.subr.bf16.mxu0 0
        %2341 = vmatpush1.bf16.msra.mxu0 0
        %2342 = vmatprep.subr.bf16.mxu0 0
        %2343 = vmatpush1.bf16.msra.mxu0 0
        %2344 = vmatprep.subr.bf16.mxu0 0
        %2345 = vmatpush1.bf16.msra.mxu0 0
        %2346 = vmatprep.subr.bf16.mxu0 0
        %2347 = vmatpush1.bf16.msra.mxu0 0
        %2348 = vmatprep.mubr.bf16.mxu0 0
        %2349 = vmatmul.mubr.bf16.gmra.mrb[0].mxu0 %v2123
        %v2350 = vpop.f32.mrb[0].mxu0
        %v2351 = vadd.f32 0.0, %v2350
        %v2352 = vpop.f32.mrb[0].mxu0
        %v2353 = vpop.f32.mrb[0].mxu0
        %v2354 = vpop.f32.mrb[0].mxu0
        %2355 = vdwg.mxu0
        %v2356 = vadd.f32 %v2083, %v2187
        %v2357 = vadd.f32 %v2084, %v2189
        %v2358 = vadd.f32 %v2085, %v2228
        %v2359 = vadd.f32 %v2086, %v2230
        %v2360 = vadd.f32 %v2087, %v2269
        %v2361 = vadd.f32 %v2088, %v2271
        %v2362 = vadd.f32 %v2089, %v2310
        %v2363 = vadd.f32 %v2090, %v2312
        %v2364 = vadd.f32 %v2091, %v2351
        %2365 = vrot.lane.b32.xlu0 %v192, 58
        %v2366 = vpop.permute.xlu0 %2365
        %2367 = vrot.lane.b32.xlu0 %v200, 58
        %v2368 = vpop.permute.xlu0 %2367
        %2369 = vrot.lane.b32.xlu0 %v199, 58
        %v2370 = vpop.permute.xlu0 %2369
        %2371 = vrot.lane.b32.xlu0 %v201, 58
        %v2372 = vpop.permute.xlu0 %2371
        %2373 = vrot.lane.b32.xlu0 %v209, 58
        %v2374 = vpop.permute.xlu0 %2373
        %2375 = vrot.lane.b32.xlu0 %v217, 58
        %v2376 = vpop.permute.xlu0 %2375
        %2377 = vrot.lane.b32.xlu0 %v216, 58
        %v2378 = vpop.permute.xlu0 %2377
        %2379 = vrot.lane.b32.xlu0 %v218, 58
        %v2380 = vpop.permute.xlu0 %2379
        %2381 = vrot.lane.b32.xlu0 %v225, 58
        %v2382 = vpop.permute.xlu0 %2381
        %2383 = vrot.lane.b32.xlu0 %v226, 58
        %v2384 = vpop.permute.xlu0 %2383
        %vm2385 = vcmask 474112
        %v2386 = vsel %vm2385, %v2366, %v2368
        %v2387 = vsel %vm2385, %v2368, %v2370
        %v2388 = vsel %vm2385, %v2370, %v2372
        %v2389 = vsel %vm2385, %v2372, %v2374
        %v2390 = vsel %vm2385, %v2374, %v2376
        %v2391 = vsel %vm2385, %v2376, %v2378
        %v2392 = vsel %vm2385, %v2378, %v2380
        %v2393 = vsel %vm2385, %v2380, %v2382
        %v2394 = vsel %vm2385, %v2382, %v2384
        %v2396 = vsel %vm257, %v181, 0
        %v2399 = vsel %vm261, %v2386, 0
        %v2402 = vsel %vm261, %v2387, 0
        %v2405 = vsel %vm261, %v2388, 0
        %v2408 = vsel %vm261, %v2389, 0
        %v2411 = vsel %vm261, %v2390, 0
        %v2414 = vsel %vm261, %v2391, 0
        %v2417 = vsel %vm261, %v2392, 0
        %v2420 = vsel %vm261, %v2393, 0
        %v2423 = vsel %vm261, %v2394, 0
        %2425 = vmatprep.subr.bf16.mxu0 %v2402
        %2426 = vmatpush1.bf16.msra.mxu0 %v2399
        %2427 = vmatprep.subr.bf16.mxu0 0
        %2428 = vmatpush1.bf16.msra.mxu0 0
        %2429 = vmatprep.subr.bf16.mxu0 0
        %2430 = vmatpush1.bf16.msra.mxu0 0
        %2431 = vmatprep.subr.bf16.mxu0 0
        %2432 = vmatpush1.bf16.msra.mxu0 0
        %2433 = vmatprep.subr.bf16.mxu0 0
        %2434 = vmatpush1.bf16.msra.mxu0 0
        %2435 = vmatprep.subr.bf16.mxu0 0
        %2436 = vmatpush1.bf16.msra.mxu0 0
        %2437 = vmatprep.subr.bf16.mxu0 0
        %2438 = vmatpush1.bf16.msra.mxu0 0
        %2439 = vmatprep.subr.bf16.mxu0 0
        %2440 = vmatpush1.bf16.msra.mxu0 0
        %2441 = vmatprep.subr.bf16.mxu0 0
        %2442 = vmatpush1.bf16.msra.mxu0 0
        %2443 = vmatprep.subr.bf16.mxu0 0
        %2444 = vmatpush1.bf16.msra.mxu0 0
        %2445 = vmatprep.subr.bf16.mxu0 0
        %2446 = vmatpush1.bf16.msra.mxu0 0
        %2447 = vmatprep.subr.bf16.mxu0 0
        %2448 = vmatpush1.bf16.msra.mxu0 0
        %2449 = vmatprep.subr.bf16.mxu0 0
        %2450 = vmatpush1.bf16.msra.mxu0 0
        %2451 = vmatprep.subr.bf16.mxu0 0
        %2452 = vmatpush1.bf16.msra.mxu0 0
        %2453 = vmatprep.subr.bf16.mxu0 0
        %2454 = vmatpush1.bf16.msra.mxu0 0
        %2455 = vmatprep.subr.bf16.mxu0 0
        %2456 = vmatpush1.bf16.msra.mxu0 0
        %2457 = vmatprep.mubr.bf16.mxu0 0
        %2458 = vmatmul.mubr.bf16.gmra.mrb[0].mxu0 %v2396
        %v2459 = vpop.f32.mrb[0].mxu0
        %v2460 = vadd.f32 0.0, %v2459
        %v2461 = vpop.f32.mrb[0].mxu0
        %v2462 = vadd.f32 0.0, %v2461
        %v2463 = vpop.f32.mrb[0].mxu0
        %v2464 = vpop.f32.mrb[0].mxu0
        %2465 = vdwg.mxu0
        %2466 = vmatprep.subr.bf16.mxu0 %v2408
        %2467 = vmatpush1.bf16.msra.mxu0 %v2405
        %2468 = vmatprep.subr.bf16.mxu0 0
        %2469 = vmatpush1.bf16.msra.mxu0 0
        %2470 = vmatprep.subr.bf16.mxu0 0
        %2471 = vmatpush1.bf16.msra.mxu0 0
        %2472 = vmatprep.subr.bf16.mxu0 0
        %2473 = vmatpush1.bf16.msra.mxu0 0
        %2474 = vmatprep.subr.bf16.mxu0 0
        %2475 = vmatpush1.bf16.msra.mxu0 0
        %2476 = vmatprep.subr.bf16.mxu0 0
        %2477 = vmatpush1.bf16.msra.mxu0 0
        %2478 = vmatprep.subr.bf16.mxu0 0
        %2479 = vmatpush1.bf16.msra.mxu0 0
        %2480 = vmatprep.subr.bf16.mxu0 0
        %2481 = vmatpush1.bf16.msra.mxu0 0
        %2482 = vmatprep.subr.bf16.mxu0 0
        %2483 = vmatpush1.bf16.msra.mxu0 0
        %2484 = vmatprep.subr.bf16.mxu0 0
        %2485 = vmatpush1.bf16.msra.mxu0 0
        %2486 = vmatprep.subr.bf16.mxu0 0
        %2487 = vmatpush1.bf16.msra.mxu0 0
        %2488 = vmatprep.subr.bf16.mxu0 0
        %2489 = vmatpush1.bf16.msra.mxu0 0
        %2490 = vmatprep.subr.bf16.mxu0 0
        %2491 = vmatpush1.bf16.msra.mxu0 0
        %2492 = vmatprep.subr.bf16.mxu0 0
        %2493 = vmatpush1.bf16.msra.mxu0 0
        %2494 = vmatprep.subr.bf16.mxu0 0
        %2495 = vmatpush1.bf16.msra.mxu0 0
        %2496 = vmatprep.subr.bf16.mxu0 0
        %2497 = vmatpush1.bf16.msra.mxu0 0
        %2498 = vmatprep.mubr.bf16.mxu0 0
        %2499 = vmatmul.mubr.bf16.gmra.mrb[0].mxu0 %v2396
        %v2500 = vpop.f32.mrb[0].mxu0
        %v2501 = vadd.f32 0.0, %v2500
        %v2502 = vpop.f32.mrb[0].mxu0
        %v2503 = vadd.f32 0.0, %v2502
        %v2504 = vpop.f32.mrb[0].mxu0
        %v2505 = vpop.f32.mrb[0].mxu0
        %2506 = vdwg.mxu0
        %2507 = vmatprep.subr.bf16.mxu0 %v2414
        %2508 = vmatpush1.bf16.msra.mxu0 %v2411
        %2509 = vmatprep.subr.bf16.mxu0 0
        %2510 = vmatpush1.bf16.msra.mxu0 0
        %2511 = vmatprep.subr.bf16.mxu0 0
        %2512 = vmatpush1.bf16.msra.mxu0 0
        %2513 = vmatprep.subr.bf16.mxu0 0
        %2514 = vmatpush1.bf16.msra.mxu0 0
        %2515 = vmatprep.subr.bf16.mxu0 0
        %2516 = vmatpush1.bf16.msra.mxu0 0
        %2517 = vmatprep.subr.bf16.mxu0 0
        %2518 = vmatpush1.bf16.msra.mxu0 0
        %2519 = vmatprep.subr.bf16.mxu0 0
        %2520 = vmatpush1.bf16.msra.mxu0 0
        %2521 = vmatprep.subr.bf16.mxu0 0
        %2522 = vmatpush1.bf16.msra.mxu0 0
        %2523 = vmatprep.subr.bf16.mxu0 0
        %2524 = vmatpush1.bf16.msra.mxu0 0
        %2525 = vmatprep.subr.bf16.mxu0 0
        %2526 = vmatpush1.bf16.msra.mxu0 0
        %2527 = vmatprep.subr.bf16.mxu0 0
        %2528 = vmatpush1.bf16.msra.mxu0 0
        %2529 = vmatprep.subr.bf16.mxu0 0
        %2530 = vmatpush1.bf16.msra.mxu0 0
        %2531 = vmatprep.subr.bf16.mxu0 0
        %2532 = vmatpush1.bf16.msra.mxu0 0
        %2533 = vmatprep.subr.bf16.mxu0 0
        %2534 = vmatpush1.bf16.msra.mxu0 0
        %2535 = vmatprep.subr.bf16.mxu0 0
        %2536 = vmatpush1.bf16.msra.mxu0 0
        %2537 = vmatprep.subr.bf16.mxu0 0
        %2538 = vmatpush1.bf16.msra.mxu0 0
        %2539 = vmatprep.mubr.bf16.mxu0 0
        %2540 = vmatmul.mubr.bf16.gmra.mrb[0].mxu0 %v2396
        %v2541 = vpop.f32.mrb[0].mxu0
        %v2542 = vadd.f32 0.0, %v2541
        %v2543 = vpop.f32.mrb[0].mxu0
        %v2544 = vadd.f32 0.0, %v2543
        %v2545 = vpop.f32.mrb[0].mxu0
        %v2546 = vpop.f32.mrb[0].mxu0
        %2547 = vdwg.mxu0
        %2548 = vmatprep.subr.bf16.mxu0 %v2420
        %2549 = vmatpush1.bf16.msra.mxu0 %v2417
        %2550 = vmatprep.subr.bf16.mxu0 0
        %2551 = vmatpush1.bf16.msra.mxu0 0
        %2552 = vmatprep.subr.bf16.mxu0 0
        %2553 = vmatpush1.bf16.msra.mxu0 0
        %2554 = vmatprep.subr.bf16.mxu0 0
        %2555 = vmatpush1.bf16.msra.mxu0 0
        %2556 = vmatprep.subr.bf16.mxu0 0
        %2557 = vmatpush1.bf16.msra.mxu0 0
        %2558 = vmatprep.subr.bf16.mxu0 0
        %2559 = vmatpush1.bf16.msra.mxu0 0
        %2560 = vmatprep.subr.bf16.mxu0 0
        %2561 = vmatpush1.bf16.msra.mxu0 0
        %2562 = vmatprep.subr.bf16.mxu0 0
        %2563 = vmatpush1.bf16.msra.mxu0 0
        %2564 = vmatprep.subr.bf16.mxu0 0
        %2565 = vmatpush1.bf16.msra.mxu0 0
        %2566 = vmatprep.subr.bf16.mxu0 0
        %2567 = vmatpush1.bf16.msra.mxu0 0
        %2568 = vmatprep.subr.bf16.mxu0 0
        %2569 = vmatpush1.bf16.msra.mxu0 0
        %2570 = vmatprep.subr.bf16.mxu0 0
        %2571 = vmatpush1.bf16.msra.mxu0 0
        %2572 = vmatprep.subr.bf16.mxu0 0
        %2573 = vmatpush1.bf16.msra.mxu0 0
        %2574 = vmatprep.subr.bf16.mxu0 0
        %2575 = vmatpush1.bf16.msra.mxu0 0
        %2576 = vmatprep.subr.bf16.mxu0 0
        %2577 = vmatpush1.bf16.msra.mxu0 0
        %2578 = vmatprep.subr.bf16.mxu0 0
        %2579 = vmatpush1.bf16.msra.mxu0 0
        %2580 = vmatprep.mubr.bf16.mxu0 0
        %2581 = vmatmul.mubr.bf16.gmra.mrb[0].mxu0 %v2396
        %v2582 = vpop.f32.mrb[0].mxu0
        %v2583 = vadd.f32 0.0, %v2582
        %v2584 = vpop.f32.mrb[0].mxu0
        %v2585 = vadd.f32 0.0, %v2584
        %v2586 = vpop.f32.mrb[0].mxu0
        %v2587 = vpop.f32.mrb[0].mxu0
        %2588 = vdwg.mxu0
        %2589 = vmatprep.subr.bf16.mxu0 0
        %2590 = vmatpush1.bf16.msra.mxu0 %v2423
        %2591 = vmatprep.subr.bf16.mxu0 0
        %2592 = vmatpush1.bf16.msra.mxu0 0
        %2593 = vmatprep.subr.bf16.mxu0 0
        %2594 = vmatpush1.bf16.msra.mxu0 0
        %2595 = vmatprep.subr.bf16.mxu0 0
        %2596 = vmatpush1.bf16.msra.mxu0 0
        %2597 = vmatprep.subr.bf16.mxu0 0
        %2598 = vmatpush1.bf16.msra.mxu0 0
        %2599 = vmatprep.subr.bf16.mxu0 0
        %2600 = vmatpush1.bf16.msra.mxu0 0
        %2601 = vmatprep.subr.bf16.mxu0 0
        %2602 = vmatpush1.bf16.msra.mxu0 0
        %2603 = vmatprep.subr.bf16.mxu0 0
        %2604 = vmatpush1.bf16.msra.mxu0 0
        %2605 = vmatprep.subr.bf16.mxu0 0
        %2606 = vmatpush1.bf16.msra.mxu0 0
        %2607 = vmatprep.subr.bf16.mxu0 0
        %2608 = vmatpush1.bf16.msra.mxu0 0
        %2609 = vmatprep.subr.bf16.mxu0 0
        %2610 = vmatpush1.bf16.msra.mxu0 0
        %2611 = vmatprep.subr.bf16.mxu0 0
        %2612 = vmatpush1.bf16.msra.mxu0 0
        %2613 = vmatprep.subr.bf16.mxu0 0
        %2614 = vmatpush1.bf16.msra.mxu0 0
        %2615 = vmatprep.subr.bf16.mxu0 0
        %2616 = vmatpush1.bf16.msra.mxu0 0
        %2617 = vmatprep.subr.bf16.mxu0 0
        %2618 = vmatpush1.bf16.msra.mxu0 0
        %2619 = vmatprep.subr.bf16.mxu0 0
        %2620 = vmatpush1.bf16.msra.mxu0 0
        %2621 = vmatprep.mubr.bf16.mxu0 0
        %2622 = vmatmul.mubr.bf16.gmra.mrb[0].mxu0 %v2396
        %v2623 = vpop.f32.mrb[0].mxu0
        %v2624 = vadd.f32 0.0, %v2623
        %v2625 = vpop.f32.mrb[0].mxu0
        %v2626 = vpop.f32.mrb[0].mxu0
        %v2627 = vpop.f32.mrb[0].mxu0
        %2628 = vdwg.mxu0
        %v2629 = vadd.f32 %v2356, %v2460
        %v2630 = vadd.f32 %v2357, %v2462
        %v2631 = vadd.f32 %v2358, %v2501
        %v2632 = vadd.f32 %v2359, %v2503
        %v2633 = vadd.f32 %v2360, %v2542
        %v2634 = vadd.f32 %v2361, %v2544
        %v2635 = vadd.f32 %v2362, %v2583
        %v2636 = vadd.f32 %v2363, %v2585
        %v2637 = vadd.f32 %v2364, %v2624
        %v2638 = vld [vmem:[%s2] sm:$0xff]
        %2640 = vset.pattern.permute.xlu0 0
        %2641 = vperm.xlu0 %2640, %v2638
        %v2642 = vpop.permute.xlu0 %2641
        %v2644 = vadd.f32 %v2629, %v2642
        %v2645 = vadd.f32 %v2630, %v2642
        %v2646 = vadd.f32 %v2631, %v2642
        %v2647 = vadd.f32 %v2632, %v2642
        %v2648 = vadd.f32 %v2633, %v2642
        %v2649 = vadd.f32 %v2634, %v2642
        %v2650 = vadd.f32 %v2635, %v2642
        %v2651 = vadd.f32 %v2636, %v2642
        %v2652 = vadd.f32 %v2637, %v2642
        %2653 = vst [vmem:[%s163] sm:$0xff] %v2644
        %2654 = vst [vmem:[%s163 + $0x8] sm:$0xff] %v2645
        %2655 = vst [vmem:[%s163 + $0x10] sm:$0xff] %v2646
        %2656 = vst [vmem:[%s163 + $0x18] sm:$0xff] %v2647
        %2657 = vst [vmem:[%s163 + $0x20] sm:$0xff] %v2648
        %2658 = vst [vmem:[%s163 + $0x28] sm:$0xff] %v2649
        %2659 = vst [vmem:[%s163 + $0x30] sm:$0xff] %v2650
        %2660 = vst [vmem:[%s163 + $0x38] sm:$0xff] %v2651
        %2661 = vst [vmem:[%s163 + $0x40] sm:$0xff] %v2652
        %s2662 = sand.u32 %s93, 1
        %s2663 = scalar_lea.sflag [#allocation3], %s2662
        %s2664 = sand.u32 %s93, 1
        %s2665 = smul.addr %s2664, 72
        %s2666 = scalar_lea.vmem [#allocation2], %s2665
        // Predicated region
        $region33: #{tpu_custom_call.1} parent=31 // pred_check
          %p2667 = pneg %p103
        $region34: #{tpu_custom_call.1} parent=31 // pred_check_branch
          %2669 = sbr.rel (%p2667) target = $region36
        $region35: #{tpu_custom_call.1} parent=31 // pred_region
          %s2671 = ssub.s32 1152, 1152
          %2672 = vsyncadd %s2663, %s2671
          %s2673 = smul.addr %s17, 9
          %s2674 = smul.addr %s2673, 128
          %s2675 = scalar_lea.hbm %s3, %s2674
          %s2677 = sshll.u32 %s2666, 4
          %s2678 = int_to_ptr.vmem [resolvable:$true] %s2677
          %2680 = dma.vmem_to_hbm [thread:$0]  %s2678, 1152, %s2675, %s2663
        $region36: #{tpu_custom_call.1} parent=31 // pred_fallthru
          _
      $region32: #{tpu_custom_call.1} parent=5 // pred_fallthru
        _
      %p2681 = scmp.le.s32.totalorder 2, %s12
      // Predicated region
      $region37: #{tpu_custom_call.1} parent=5 // pred_check
        %p2682 = pneg %p2681
      $region38: #{tpu_custom_call.1} parent=5 // pred_check_branch
        %2684 = sbr.rel (%p2682) target = $region40
      $region39: #{tpu_custom_call.1} parent=5 // pred_region
        %s2685 = ssub.s32 %s12, 2
        // Predicated region
        $region41: #{tpu_custom_call.1} parent=39 // pred_check
          %p2686 = pneg %p109
        $region42: #{tpu_custom_call.1} parent=39 // pred_check_branch
          %2688 = sbr.rel (%p2686) target = $region44
        $region43: #{tpu_custom_call.1} parent=39 // pred_region
          %s2689 = sand.u32 %s94, 1
          %s2690 = scalar_lea.sflag [#allocation3], %s2689
          %s2691 = sand.u32 %s94, 1
          %s2692 = smul.addr %s2691, 72
          %s2693 = scalar_lea.vmem [#allocation2], %s2692
          %2694 = dma.done %s2690, 1152
        $region44: #{tpu_custom_call.1} parent=39 // pred_fallthru
          _
      $region40: #{tpu_custom_call.1} parent=5 // pred_fallthru
        _
    $region6: #{tpu_custom_call.1} parent=1 // loop_footer
      %s16 = sadd.s32 1, %s12
    $region7: #{tpu_custom_call.1} parent=1 // loop_footer_branch
      %11 = sbr.rel target = $region3
    $region8: #{tpu_custom_call.1} parent=1 // loop_exit
      _
    %2695 = vsyncpa [#allocation3], 1
    %s2696 = scalar_lea.sflag [#allocation3], 1
    %2697 = vsyncpa %s2696, 1

</llo_original>
